<compile_context>
chip_gen: v7x
topology: tpu7x:2x2x1
jax: 0.10.0
libtpu: 0.0.40
codegen_flags: <defaults>
</compile_context>

<pallas_src>
import numpy as np
import jax
import jax.numpy as jnp
from jax import lax
from jax.experimental import pallas as pl
from jax.experimental.pallas import tpu as pltpu

# ----------------------------- module constants -----------------------------
MARGIN = 0.5                     # ContrastiveLoss neg_margin (overridden by ref_neg)
OFFSET = 0.5
MINER_POS_MARGIN = 0.75          # PairMarginMiner(0.75, 0.5, use_similarity=0)
MINER_NEG_MARGIN = 0.5
KEYS = range(3)
LDS_DIM = {i: i + 4 for i in KEYS}            # {0: 4, 1: 5, 2: 6}
# unused-in-forward buffers from __init__, kept for fidelity
P_BUFFERS = {i: np.concatenate([np.zeros(LDS_DIM[i] - 1), np.ones(1)]) for i in KEYS}


# ---------------------- Pallas kernel: mined contrastive --------------------
def _pair_contrastive_kernel(xr_ref, xc_ref, sqr_ref, sqc_ref,
                             labr_ref, labc_ref, valr_ref, valc_ref,
                             margins_ref, out_ref,
                             acc_ps, acc_pc, acc_ns, acc_nc):
    i = pl.program_id(0)
    j = pl.program_id(1)
    nj = pl.num_programs(1)

    # Upper-triangle tiles only; mirrored tiles contribute identically
    # (distance, labels, validity are all symmetric), so doubling off-diagonal
    # sums AND counts leaves the per-term averages exactly unchanged.
    @pl.when(j >= i)
    def _compute():
        @pl.when(j == i)       # first computed column tile of this row tile
        def _():
            acc_ps[...] = jnp.zeros_like(acc_ps)
            acc_pc[...] = jnp.zeros_like(acc_pc)
            acc_ns[...] = jnp.zeros_like(acc_ns)
            acc_nc[...] = jnp.zeros_like(acc_nc)

        xr = xr_ref[...]                                    # (t, Dp) bf16 row tile
        xc = xc_ref[...]                                    # (t, Dp) bf16 col tile

        # |xi - xj|^2 = |xi|^2 + |xj|^2 - 2 xi.xj
        # Gram in bf16 on the MXU (review: full-rate pass, half the DMA bytes);
        # norms are exact f32 computed once in the wrapper.
        gram = lax.dot_general(xr, xc, (((1,), (1,)), ((), ())),
                               preferred_element_type=jnp.float32)   # (t, t) f32
        d2 = jnp.maximum(sqr_ref[...] + sqc_ref[...] - 2.0 * gram, 0.0)
        d = jnp.sqrt(d2)

        # PairMarginMiner(0.75, 0.5, use_similarity=False), compared in squared
        # space (monotonic).  Pad rows/cols are killed by the validity product;
        # the real diagonal has d = 0 (fails d > 0.75) and same label (excluded
        # from negatives).
        same = (labr_ref[...] == labc_ref[...]).astype(jnp.float32)  # (t, t)
        valid = valr_ref[...] * valc_ref[...]                        # (t, t)

        ref_pos = margins_ref[0]
        ref_neg = margins_ref[1]

        # AvgNonZeroReducer counts strictly-positive hinge terms, so the count
        # element doubles as the hinge mask: hinge = (d - ref) * count_elem.
        pos_c = (same * valid
                 * (d2 > MINER_POS_MARGIN * MINER_POS_MARGIN).astype(jnp.float32)
                 * (d2 > ref_pos * ref_pos).astype(jnp.float32))
        neg_c = ((1.0 - same) * valid
                 * (d2 < MINER_NEG_MARGIN * MINER_NEG_MARGIN).astype(jnp.float32)
                 * (d2 < ref_neg * ref_neg).astype(jnp.float32))
        pos_s = (d - ref_pos) * pos_c
        neg_s = (ref_neg - d) * neg_c

        # Lane-parallel partial reduction: collapse the tk lane-groups with
        # plain vreg adds (lane-aligned 128-wide slices, no XLU) and accumulate
        # (t, 128) partials in VMEM scratch.  Full scalar reduction happens
        # only once per row tile, at the last column step.
        def fold(v):                                        # (t, tk) -> (t, 128)
            r = v[:, 0:128]
            for c0 in range(128, v.shape[1], 128):
                r = r + v[:, c0:c0 + 128]
            return r

        w = 2.0 - (j == i).astype(jnp.float32)              # 1.0 diag, 2.0 off-diag
        acc_ps[...] += w * fold(pos_s)
        acc_pc[...] += w * fold(pos_c)
        acc_ns[...] += w * fold(neg_s)
        acc_nc[...] += w * fold(neg_c)

        @pl.when(j == nj - 1)   # last column tile: collapse + one lane-dense store
        def _():
            lane = lax.broadcasted_iota(jnp.int32, (1, 1, 128), 2)

            def pack(idx, ref):
                return jnp.where(lane == idx, jnp.sum(ref[...]), 0.0)

            out_ref[...] = (pack(0, acc_ps) + pack(1, acc_pc)
                            + pack(2, acc_ns) + pack(3, acc_nc))


def _tpu_vmem_capacity_bytes():
    try:
        return int(pltpu.get_tpu_info().vmem_capacity_bytes)
    except Exception:
        return 64 * 1024 * 1024          # conservative (v7x-sized) fallback


def _pick_tile(Bp, Dp, vmem_cap):
    """Square, 128-aligned tile that (a) keeps >= 2 row tiles whenever Bp
    allows it (v7x dual-TC sharding + pipelining) and (b) fits a VMEM budget
    accounting for the bf16 x blocks (O(t*Dp)), the f32 (t,t) intermediates,
    and the (t,128) stat accumulators.  tq == tk is required by the
    tile-level symmetry scheme."""
    budget = min(vmem_cap // 2, 48 * 1024 * 1024)
    best = 128
    for t in (256, 512):
        if Bp % t != 0 or Bp // t < 2:
            continue
        need = (2 * 2 * t * Dp * 2       # 2 bf16 x operands x double buffering
                + 8 * t * t * 4          # live f32 (t, t) intermediates
                + 4 * t * 128 * 4)       # stats accumulator scratch
        if need <= budget:
            best = t
    return best


def pairwise_contrastive_sums(x, labels, ref_pos, ref_neg):
    """Returns (pos_sum, pos_cnt, neg_sum, neg_cnt) over mined pairs."""
    B, D = x.shape
    x = x.astype(jnp.float32)
    Bp = ((B + 127) // 128) * 128        # pad batch: 128-aligned lane/MXU tiles
    Dp = ((D + 127) // 128) * 128        # pad features: MXU-aligned K (zeros inert)

    x_pad = jnp.zeros((Bp, Dp), jnp.float32).at[:B, :D].set(x)
    lab_pad = jnp.full((Bp,), -1, jnp.int32).at[:B].set(labels.astype(jnp.int32))
    valid = jnp.zeros((Bp,), jnp.float32).at[:B].set(1.0)

    sq = jnp.sum(x_pad * x_pad, axis=1)          # exact f32 squared norms, once
    x_bf = x_pad.astype(jnp.bfloat16)            # bf16 Gram operands

    vmem_cap = _tpu_vmem_capacity_bytes()
    t = _pick_tile(Bp, Dp, vmem_cap)
    gi = gj = Bp // t
    vmem_limit = int(min(vmem_cap * 3 // 4, 96 * 1024 * 1024))

    margins = jnp.stack([ref_pos, ref_neg]).astype(jnp.float32)   # (2,) -> SMEM

    out = pl.pallas_call(
        _pair_contrastive_kernel,
        out_shape=jax.ShapeDtypeStruct((gi, 1, 128), jnp.float32),
        grid_spec=pltpu.PrefetchScalarGridSpec(
            num_scalar_prefetch=0,
            grid=(gi, gj),
            in_specs=[
                pl.BlockSpec((t, Dp), lambda i, j: (i, 0)),          # x row tile (bf16)
                pl.BlockSpec((t, Dp), lambda i, j: (j, 0)),          # x col tile (bf16)
                pl.BlockSpec((t, 1), lambda i, j: (i, 0)),           # |x_i|^2 rows
                pl.BlockSpec((1, t), lambda i, j: (0, j)),           # |x_j|^2 cols
                pl.BlockSpec((t, 1), lambda i, j: (i, 0)),           # row labels
                pl.BlockSpec((1, t), lambda i, j: (0, j)),           # col labels
                pl.BlockSpec((t, 1), lambda i, j: (i, 0)),           # row validity
                pl.BlockSpec((1, t), lambda i, j: (0, j)),           # col validity
                pl.BlockSpec(memory_space=pltpu.MemorySpace.SMEM),   # (ref_pos, ref_neg)
            ],
            out_specs=pl.BlockSpec((1, 1, 128), lambda i, j: (i, 0, 0)),
            scratch_shapes=[pltpu.VMEM((t, 128), jnp.float32)] * 4,
        ),
        compiler_params=pltpu.CompilerParams(
            # row tiles are independent -> megacore-shardable on v7x; the
            # column axis reduces into the resident accumulators/output block.
            dimension_semantics=("parallel", "arbitrary"),
            vmem_limit_bytes=vmem_limit,
        ),
    )(x_bf, x_bf,
      sq.reshape(Bp, 1), sq.reshape(1, Bp),
      lab_pad.reshape(Bp, 1), lab_pad.reshape(1, Bp),
      valid.reshape(Bp, 1), valid.reshape(1, Bp),
      margins)

    stats = jnp.sum(out[:, 0, :4], axis=0)       # reduce per-row-tile lane packs
    return stats[0], stats[1], stats[2], stats[3]


# ------------------------------ General_Logmap -------------------------------
def general_logmap(x_proj):
    # O(B*(dim-1)) ~ tens of elements: a dedicated pallas_call would be pure
    # launch + DMA overhead, so this is plain jnp.  Mean is over the FULL row
    # (as in the reference).  NOTE: the last coordinate is clamped away from
    # +/-1 (1e-6) to avoid the 0/0 and /0 singularities of theta/sin(theta) —
    # an intentional deviation from the reference's NaN/Inf behaviour there.
    B, dim = x_proj.shape
    last = jnp.clip(x_proj[:, dim - 1], -1.0 + 1e-6, 1.0 - 1e-6)
    theta = jnp.arccos(last)
    scale = (theta / jnp.sin(theta)).reshape(B, 1)
    mean = jnp.mean(x_proj, axis=1, keepdims=True)
    return ((x_proj[:, : dim - 1] - mean) * scale).astype(jnp.float32)


# ---------------------------------- glue -------------------------------------
def isomap_substitute(x_np, n_components):
    # TODO(synk): sklearn Isomap (kNN graph + geodesic MDS) has no Pallas/JAX
    # equivalent; substituted with a deterministic PCA projection of the same shape.
    xc = x_np - x_np.mean(axis=0, keepdims=True)
    _, v = np.linalg.eigh(xc.T @ xc)
    comps = v[:, ::-1][:, :n_components]
    return xc @ comps


def linear_discriminant_analysis(batch, labels, dimension):
    batch = np.asarray(batch, dtype=np.float64)
    labels = np.asarray(labels)
    uniq = np.unique(labels)
    mean_vectors = np.stack([batch[labels == c].mean(axis=0) for c in uniq])
    S_W = np.zeros((dimension, dimension))
    for ci, c in enumerate(uniq):
        Xc = batch[labels == c] - mean_vectors[ci]
        S_W += Xc.T @ Xc
    overall_mean = batch.mean(axis=0)
    S_B = np.zeros((dimension, dimension))
    for mv in mean_vectors:
        diff = (mv - overall_mean).reshape(dimension, 1)
        S_B += 4.0 * diff @ diff.T
    fisher = np.linalg.inv(S_W + 0.001 * np.eye(dimension)) @ S_B
    # TODO(synk): nonsymmetric eigendecomposition (torch.eig) has no Pallas/TPU
    # equivalent; done on host with numpy (the reference also ran it on CPU tensors).
    eigval, eigvec = np.linalg.eig(fisher)
    eigval = np.real(eigval)
    eigvec = np.real(eigvec)
    order = np.argsort(-eigval)
    return eigval[order], eigvec[:, order[0]].reshape(dimension, 1)


def ppgml_contrastive_loss(embeddings, labels, key):
    X = embeddings.astype(jnp.float32)
    B, D = X.shape

    # Isomap projections + PIP-loss selection: tiny, host-eig-based -> numpy glue
    # (single device->host transfer of X, no per-key device syncs).
    Xn = np.asarray(X, dtype=np.float64)
    X_proj_np, pip_loss = {}, {}
    for i in KEYS:
        X_proj_np[i] = isomap_substitute(Xn, LDS_DIM[i])
        v = X_proj_np[i].T @ Xn[:, D - LDS_DIM[i]]
        pip_loss[i] = 0.001 * (D - LDS_DIM[i]) + 2.0 * float(np.sum(v * v))
    min_ind = min(pip_loss, key=pip_loss.get)

    # F.normalize(..., dim=1)
    Xp = jnp.asarray(X_proj_np[min_ind], dtype=jnp.float32)
    Xp = Xp / jnp.maximum(jnp.linalg.norm(Xp, axis=1, keepdims=True), 1e-12)

    X_log = general_logmap(Xp)
    k = LDS_DIM[min_ind] - 1

    eigval, eigvec = linear_discriminant_analysis(np.asarray(X_log), np.asarray(labels), k)
    eig_mean = float(eigval.mean())
    mean_log = abs(eig_mean) * 0.1
    center = jnp.abs(X.mean()) + OFFSET

    # TODO(synk): torch.distributions.Uniform.rsample replaced by jax.random.uniform.
    unif_ref = jax.random.uniform(key, (B, k), dtype=jnp.float32,
                                  minval=center - mean_log, maxval=center + mean_log)
    ref = jnp.mean(jnp.abs(unif_ref @ jnp.asarray(eigvec, dtype=jnp.float32)))
    ref_clamped = jnp.clip(jnp.sqrt(ref), 0.7, 1.5)
    ref_pos = ref_clamped
    ref_neg = ref_clamped

    # Pallas: tiled, symmetry-exploiting pair mining + contrastive hinge terms
    pos_sum, pos_cnt, neg_sum, neg_cnt = pairwise_contrastive_sums(X, labels, ref_pos, ref_neg)
    # AvgNonZeroReducer per term (pytorch-metric-learning ContrastiveLoss), terms summed
    pos_avg = pos_sum / jnp.maximum(pos_cnt, 1.0)
    neg_avg = neg_sum / jnp.maximum(neg_cnt, 1.0)
    contrastive = pos_avg + neg_avg

    return contrastive - 1e-6 * eig_mean


# --------------------------------- main --------------------------------------
if __name__ == "__main__":
    # Small demo shapes (padded to 128x128 internally); the tiled, symmetric
    # grid and VMEM-aware tile pick pay off at realistic batches (B >= 256).
    B, D = 8, 32
    key = jax.random.PRNGKey(0)
    k_emb, k_unif = jax.random.split(key)
    embeddings = jax.random.normal(k_emb, (B, D), dtype=jnp.float32)
    labels = jnp.array([0, 0, 0, 0, 1, 1, 1, 1], dtype=jnp.int32)

    loss = ppgml_contrastive_loss(embeddings, labels, k_unif)
    jax.block_until_ready(loss)
    print("KERNEL_OK")
</pallas_src>

<mosaic_0001>
module attributes {stable_mosaic.version = 11 : i64} {
  func.func @_pair_contrastive_kernel(%arg0: i32, %arg1: i32, %arg2: memref<128x128xbf16, #tpu.memory_space<vmem>>, %arg3: memref<128x128xbf16, #tpu.memory_space<vmem>>, %arg4: memref<128x1xf32, #tpu.memory_space<vmem>>, %arg5: memref<1x128xf32, #tpu.memory_space<vmem>>, %arg6: memref<128x1xi32, #tpu.memory_space<vmem>>, %arg7: memref<1x128xi32, #tpu.memory_space<vmem>>, %arg8: memref<128x1xf32, #tpu.memory_space<vmem>>, %arg9: memref<1x128xf32, #tpu.memory_space<vmem>>, %arg10: memref<2xf32, #tpu.memory_space<smem>>, %arg11: memref<1x1x128xf32, #tpu.memory_space<vmem>>, %arg12: memref<128x128xf32, #tpu.memory_space<vmem>>, %arg13: memref<128x128xf32, #tpu.memory_space<vmem>>, %arg14: memref<128x128xf32, #tpu.memory_space<vmem>>, %arg15: memref<128x128xf32, #tpu.memory_space<vmem>>) attributes {dimension_semantics = [#tpu.dimension_semantics<parallel>, #tpu.dimension_semantics<arbitrary>], iteration_bounds = array<i64: 1, 1>, scalar_prefetch = 0 : i64, scratch_operands = 4 : i64, tpu.core_type = #tpu.core_type<tc>, window_params = [{transform_indices = @transform_0, window_bounds = array<i64: 128, 128>}, {transform_indices = @transform_1, window_bounds = array<i64: 128, 128>}, {transform_indices = @transform_2, window_bounds = array<i64: 128, 1>}, {transform_indices = @transform_3, window_bounds = array<i64: 1, 128>}, {transform_indices = @transform_4, window_bounds = array<i64: 128, 1>}, {transform_indices = @transform_5, window_bounds = array<i64: 1, 128>}, {transform_indices = @transform_6, window_bounds = array<i64: 128, 1>}, {transform_indices = @transform_7, window_bounds = array<i64: 1, 128>}, {transform_indices = @transform_8, window_bounds = array<i64: 2>}, {transform_indices = @transform_9, window_bounds = array<i64: 1, 1, 128>}]} {
    %0 = arith.cmpi sge, %arg1, %arg0 : i32
    %1 = arith.extui %0 : i1 to i32
    %c0_i32 = arith.constant 0 : i32
    %2 = arith.cmpi ne, %1, %c0_i32 : i32
    scf.if %2 {
      %3 = arith.cmpi eq, %arg1, %arg0 : i32
      %4 = arith.extui %3 : i1 to i32
      %c0_i32_0 = arith.constant 0 : i32
      %5 = arith.cmpi ne, %4, %c0_i32_0 : i32
      scf.if %5 {
        %cst_41 = arith.constant 0.000000e+00 : f32
        %93 = vector.broadcast %cst_41 : f32 to vector<128x128xf32>
        %c0_42 = arith.constant 0 : index
        %c0_43 = arith.constant 0 : index
        %94 = vector.load %arg12[%c0_42, %c0_43] : memref<128x128xf32, #tpu.memory_space<vmem>>, vector<128x128xf32>
        tpu.vector_store %arg12[%c0_42, %c0_43], %93 {strides = array<i32>} : memref<128x128xf32, #tpu.memory_space<vmem>>, vector<128x128xf32>,
        %cst_44 = arith.constant 0.000000e+00 : f32
        %95 = vector.broadcast %cst_44 : f32 to vector<128x128xf32>
        %c0_45 = arith.constant 0 : index
        %c0_46 = arith.constant 0 : index
        %96 = vector.load %arg13[%c0_45, %c0_46] : memref<128x128xf32, #tpu.memory_space<vmem>>, vector<128x128xf32>
        tpu.vector_store %arg13[%c0_45, %c0_46], %95 {strides = array<i32>} : memref<128x128xf32, #tpu.memory_space<vmem>>, vector<128x128xf32>,
        %cst_47 = arith.constant 0.000000e+00 : f32
        %97 = vector.broadcast %cst_47 : f32 to vector<128x128xf32>
        %c0_48 = arith.constant 0 : index
        %c0_49 = arith.constant 0 : index
        %98 = vector.load %arg14[%c0_48, %c0_49] : memref<128x128xf32, #tpu.memory_space<vmem>>, vector<128x128xf32>
        tpu.vector_store %arg14[%c0_48, %c0_49], %97 {strides = array<i32>} : memref<128x128xf32, #tpu.memory_space<vmem>>, vector<128x128xf32>,
        %cst_50 = arith.constant 0.000000e+00 : f32
        %99 = vector.broadcast %cst_50 : f32 to vector<128x128xf32>
        %c0_51 = arith.constant 0 : index
        %c0_52 = arith.constant 0 : index
        %100 = vector.load %arg15[%c0_51, %c0_52] : memref<128x128xf32, #tpu.memory_space<vmem>>, vector<128x128xf32>
        tpu.vector_store %arg15[%c0_51, %c0_52], %99 {strides = array<i32>} : memref<128x128xf32, #tpu.memory_space<vmem>>, vector<128x128xf32>,
      } else {
      }
      %c0 = arith.constant 0 : index
      %c0_1 = arith.constant 0 : index
      %6 = vector.load %arg2[%c0, %c0_1] : memref<128x128xbf16, #tpu.memory_space<vmem>>, vector<128x128xbf16>
      %c0_2 = arith.constant 0 : index
      %c0_3 = arith.constant 0 : index
      %7 = vector.load %arg3[%c0_2, %c0_3] : memref<128x128xbf16, #tpu.memory_space<vmem>>, vector<128x128xbf16>
      %cst = arith.constant dense<0.000000e+00> : vector<128x128xf32>
      %8 = tpu.matmul %6, %7, %cst {dimension_numbers = #tpu.dot_dimension_numbers<[1], [1], [0], [0], [0, 0, 1, 0], [], []>} : vector<128x128xbf16>, vector<128x128xbf16>, vector<128x128xf32> -> vector<128x128xf32>
      %c0_4 = arith.constant 0 : index
      %c0_5 = arith.constant 0 : index
      %9 = vector.load %arg4[%c0_4, %c0_5] : memref<128x1xf32, #tpu.memory_space<vmem>>, vector<128x1xf32>
      %c0_6 = arith.constant 0 : index
      %c0_7 = arith.constant 0 : index
      %10 = vector.load %arg5[%c0_6, %c0_7] : memref<1x128xf32, #tpu.memory_space<vmem>>, vector<1x128xf32>
      %11 = vector.broadcast %9 : vector<128x1xf32> to vector<128x128xf32>
      %12 = vector.broadcast %10 : vector<1x128xf32> to vector<128x128xf32>
      %13 = arith.addf %11, %12 : vector<128x128xf32>
      %cst_8 = arith.constant 2.000000e+00 : f32
      %14 = vector.broadcast %cst_8 : f32 to vector<128x128xf32>
      %15 = arith.mulf %14, %8 : vector<128x128xf32>
      %16 = arith.subf %13, %15 : vector<128x128xf32>
      %cst_9 = arith.constant 0.000000e+00 : f32
      %17 = vector.broadcast %cst_9 : f32 to vector<128x128xf32>
      %18 = arith.maximumf %16, %17 : vector<128x128xf32>
      %19 = math.sqrt %18 : vector<128x128xf32>
      %c0_10 = arith.constant 0 : index
      %c0_11 = arith.constant 0 : index
      %20 = vector.load %arg6[%c0_10, %c0_11] : memref<128x1xi32, #tpu.memory_space<vmem>>, vector<128x1xi32>
      %c0_12 = arith.constant 0 : index
      %c0_13 = arith.constant 0 : index
      %21 = vector.load %arg7[%c0_12, %c0_13] : memref<1x128xi32, #tpu.memory_space<vmem>>, vector<1x128xi32>
      %22 = vector.broadcast %20 : vector<128x1xi32> to vector<128x128xi32>
      %23 = vector.broadcast %21 : vector<1x128xi32> to vector<128x128xi32>
      %24 = arith.cmpi eq, %22, %23 : vector<128x128xi32>
      %25 = arith.extui %24 : vector<128x128xi1> to vector<128x128xi32>
      %26 = arith.sitofp %25 : vector<128x128xi32> to vector<128x128xf32>
      %c0_14 = arith.constant 0 : index
      %c0_15 = arith.constant 0 : index
      %27 = vector.load %arg8[%c0_14, %c0_15] : memref<128x1xf32, #tpu.memory_space<vmem>>, vector<128x1xf32>
      %c0_16 = arith.constant 0 : index
      %c0_17 = arith.constant 0 : index
      %28 = vector.load %arg9[%c0_16, %c0_17] : memref<1x128xf32, #tpu.memory_space<vmem>>, vector<1x128xf32>
      %29 = vector.broadcast %27 : vector<128x1xf32> to vector<128x128xf32>
      %30 = vector.broadcast %28 : vector<1x128xf32> to vector<128x128xf32>
      %31 = arith.mulf %29, %30 : vector<128x128xf32>
      %c0_18 = arith.constant 0 : index
      %32 = memref.load %arg10[%c0_18] : memref<2xf32, #tpu.memory_space<smem>>
      %c1 = arith.constant 1 : index
      %33 = memref.load %arg10[%c1] : memref<2xf32, #tpu.memory_space<smem>>
      %34 = arith.mulf %26, %31 : vector<128x128xf32>
      %cst_19 = arith.constant 5.625000e-01 : f32
      %35 = vector.broadcast %cst_19 : f32 to vector<128x128xf32>
      %36 = arith.cmpf ogt, %18, %35 : vector<128x128xf32>
      %37 = arith.extui %36 : vector<128x128xi1> to vector<128x128xi32>
      %38 = arith.sitofp %37 : vector<128x128xi32> to vector<128x128xf32>
      %39 = arith.mulf %34, %38 : vector<128x128xf32>
      %40 = arith.mulf %32, %32 : f32
      %41 = vector.broadcast %40 : f32 to vector<128x128xf32>
      %42 = arith.cmpf ogt, %18, %41 : vector<128x128xf32>
      %43 = arith.extui %42 : vector<128x128xi1> to vector<128x128xi32>
      %44 = arith.sitofp %43 : vector<128x128xi32> to vector<128x128xf32>
      %45 = arith.mulf %39, %44 : vector<128x128xf32>
      %cst_20 = arith.constant 1.000000e+00 : f32
      %46 = vector.broadcast %cst_20 : f32 to vector<128x128xf32>
      %47 = arith.subf %46, %26 : vector<128x128xf32>
      %48 = arith.mulf %47, %31 : vector<128x128xf32>
      %cst_21 = arith.constant 2.500000e-01 : f32
      %49 = vector.broadcast %cst_21 : f32 to vector<128x128xf32>
      %50 = arith.cmpf olt, %18, %49 : vector<128x128xf32>
      %51 = arith.extui %50 : vector<128x128xi1> to vector<128x128xi32>
      %52 = arith.sitofp %51 : vector<128x128xi32> to vector<128x128xf32>
      %53 = arith.mulf %48, %52 : vector<128x128xf32>
      %54 = arith.mulf %33, %33 : f32
      %55 = vector.broadcast %54 : f32 to vector<128x128xf32>
      %56 = arith.cmpf olt, %18, %55 : vector<128x128xf32>
      %57 = arith.extui %56 : vector<128x128xi1> to vector<128x128xi32>
      %58 = arith.sitofp %57 : vector<128x128xi32> to vector<128x128xf32>
      %59 = arith.mulf %53, %58 : vector<128x128xf32>
      %60 = vector.broadcast %32 : f32 to vector<128x128xf32>
      %61 = arith.subf %19, %60 : vector<128x128xf32>
      %62 = arith.mulf %61, %45 : vector<128x128xf32>
      %63 = vector.broadcast %33 : f32 to vector<128x128xf32>
      %64 = arith.subf %63, %19 : vector<128x128xf32>
      %65 = arith.mulf %64, %59 : vector<128x128xf32>
      %66 = arith.cmpi eq, %arg1, %arg0 : i32
      %67 = arith.extui %66 : i1 to i32
      %68 = arith.sitofp %67 : i32 to f32
      %cst_22 = arith.constant 2.000000e+00 : f32
      %69 = arith.subf %cst_22, %68 : f32
      %c0_23 = arith.constant 0 : index
      %c0_24 = arith.constant 0 : index
      %70 = vector.load %arg12[%c0_23, %c0_24] : memref<128x128xf32, #tpu.memory_space<vmem>>, vector<128x128xf32>
      %71 = vector.broadcast %69 : f32 to vector<128x128xf32>
      %72 = arith.mulf %71, %62 : vector<128x128xf32>
      %73 = arith.addf %70, %72 : vector<128x128xf32>
      %c0_25 = arith.constant 0 : index
      %c0_26 = arith.constant 0 : index
      %74 = vector.load %arg12[%c0_25, %c0_26] : memref<128x128xf32, #tpu.memory_space<vmem>>, vector<128x128xf32>
      tpu.vector_store %arg12[%c0_25, %c0_26], %73 {strides = array<i32>} : memref<128x128xf32, #tpu.memory_space<vmem>>, vector<128x128xf32>,
      %c0_27 = arith.constant 0 : index
      %c0_28 = arith.constant 0 : index
      %75 = vector.load %arg13[%c0_27, %c0_28] : memref<128x128xf32, #tpu.memory_space<vmem>>, vector<128x128xf32>
      %76 = vector.broadcast %69 : f32 to vector<128x128xf32>
      %77 = arith.mulf %76, %45 : vector<128x128xf32>
      %78 = arith.addf %75, %77 : vector<128x128xf32>
      %c0_29 = arith.constant 0 : index
      %c0_30 = arith.constant 0 : index
      %79 = vector.load %arg13[%c0_29, %c0_30] : memref<128x128xf32, #tpu.memory_space<vmem>>, vector<128x128xf32>
      tpu.vector_store %arg13[%c0_29, %c0_30], %78 {strides = array<i32>} : memref<128x128xf32, #tpu.memory_space<vmem>>, vector<128x128xf32>,
      %c0_31 = arith.constant 0 : index
      %c0_32 = arith.constant 0 : index
      %80 = vector.load %arg14[%c0_31, %c0_32] : memref<128x128xf32, #tpu.memory_space<vmem>>, vector<128x128xf32>
      %81 = vector.broadcast %69 : f32 to vector<128x128xf32>
      %82 = arith.mulf %81, %65 : vector<128x128xf32>
      %83 = arith.addf %80, %82 : vector<128x128xf32>
      %c0_33 = arith.constant 0 : index
      %c0_34 = arith.constant 0 : index
      %84 = vector.load %arg14[%c0_33, %c0_34] : memref<128x128xf32, #tpu.memory_space<vmem>>, vector<128x128xf32>
      tpu.vector_store %arg14[%c0_33, %c0_34], %83 {strides = array<i32>} : memref<128x128xf32, #tpu.memory_space<vmem>>, vector<128x128xf32>,
      %c0_35 = arith.constant 0 : index
      %c0_36 = arith.constant 0 : index
      %85 = vector.load %arg15[%c0_35, %c0_36] : memref<128x128xf32, #tpu.memory_space<vmem>>, vector<128x128xf32>
      %86 = vector.broadcast %69 : f32 to vector<128x128xf32>
      %87 = arith.mulf %86, %59 : vector<128x128xf32>
      %88 = arith.addf %85, %87 : vector<128x128xf32>
      %c0_37 = arith.constant 0 : index
      %c0_38 = arith.constant 0 : index
      %89 = vector.load %arg15[%c0_37, %c0_38] : memref<128x128xf32, #tpu.memory_space<vmem>>, vector<128x128xf32>
      tpu.vector_store %arg15[%c0_37, %c0_38], %88 {strides = array<i32>} : memref<128x128xf32, #tpu.memory_space<vmem>>, vector<128x128xf32>,
      %c0_i32_39 = arith.constant 0 : i32
      %90 = arith.cmpi eq, %arg1, %c0_i32_39 : i32
      %91 = arith.extui %90 : i1 to i32
      %c0_i32_40 = arith.constant 0 : i32
      %92 = arith.cmpi ne, %91, %c0_i32_40 : i32
      scf.if %92 {
        %93 = tpu.iota {dimensions = array<i32: 2>} : vector<1x1x128xi32>
        %c0_i32_41 = arith.constant 0 : i32
        %94 = vector.broadcast %c0_i32_41 : i32 to vector<1x1x128xi32>
        %95 = arith.cmpi eq, %93, %94 : vector<1x1x128xi32>
        %c0_42 = arith.constant 0 : index
        %c0_43 = arith.constant 0 : index
        %96 = vector.load %arg12[%c0_42, %c0_43] : memref<128x128xf32, #tpu.memory_space<vmem>>, vector<128x128xf32>
        %97 = vector.shape_cast %96 : vector<128x128xf32> to vector<1x128x128xf32>
        %cst_44 = arith.constant dense<0.000000e+00> : vector<1xf32>
        %98 = vector.multi_reduction <add>, %97, %cst_44 [1, 2] : vector<1x128x128xf32> to vector<1xf32>
        %99 = vector.shape_cast %98 : vector<1xf32> to vector<1x1x1xf32>
        %100 = vector.extract %99[0, 0, 0] : f32 from vector<1x1x1xf32>
        %cst_45 = arith.constant 0.000000e+00 : f32
        %101 = vector.broadcast %100 : f32 to vector<1x1x128xf32>
        %102 = vector.broadcast %cst_45 : f32 to vector<1x1x128xf32>
        %103 = arith.select %95, %101, %102 : vector<1x1x128xi1>, vector<1x1x128xf32>
        %c1_i32 = arith.constant 1 : i32
        %104 = vector.broadcast %c1_i32 : i32 to vector<1x1x128xi32>
        %105 = arith.cmpi eq, %93, %104 : vector<1x1x128xi32>
        %c0_46 = arith.constant 0 : index
        %c0_47 = arith.constant 0 : index
        %106 = vector.load %arg13[%c0_46, %c0_47] : memref<128x128xf32, #tpu.memory_space<vmem>>, vector<128x128xf32>
        %107 = vector.shape_cast %106 : vector<128x128xf32> to vector<1x128x128xf32>
        %cst_48 = arith.constant dense<0.000000e+00> : vector<1xf32>
        %108 = vector.multi_reduction <add>, %107, %cst_48 [1, 2] : vector<1x128x128xf32> to vector<1xf32>
        %109 = vector.shape_cast %108 : vector<1xf32> to vector<1x1x1xf32>
        %110 = vector.extract %109[0, 0, 0] : f32 from vector<1x1x1xf32>
        %cst_49 = arith.constant 0.000000e+00 : f32
        %111 = vector.broadcast %110 : f32 to vector<1x1x128xf32>
        %112 = vector.broadcast %cst_49 : f32 to vector<1x1x128xf32>
        %113 = arith.select %105, %111, %112 : vector<1x1x128xi1>, vector<1x1x128xf32>
        %114 = arith.addf %103, %113 : vector<1x1x128xf32>
        %c2_i32 = arith.constant 2 : i32
        %115 = vector.broadcast %c2_i32 : i32 to vector<1x1x128xi32>
        %116 = arith.cmpi eq, %93, %115 : vector<1x1x128xi32>
        %c0_50 = arith.constant 0 : index
        %c0_51 = arith.constant 0 : index
        %117 = vector.load %arg14[%c0_50, %c0_51] : memref<128x128xf32, #tpu.memory_space<vmem>>, vector<128x128xf32>
        %118 = vector.shape_cast %117 : vector<128x128xf32> to vector<1x128x128xf32>
        %cst_52 = arith.constant dense<0.000000e+00> : vector<1xf32>
        %119 = vector.multi_reduction <add>, %118, %cst_52 [1, 2] : vector<1x128x128xf32> to vector<1xf32>
        %120 = vector.shape_cast %119 : vector<1xf32> to vector<1x1x1xf32>
        %121 = vector.extract %120[0, 0, 0] : f32 from vector<1x1x1xf32>
        %cst_53 = arith.constant 0.000000e+00 : f32
        %122 = vector.broadcast %121 : f32 to vector<1x1x128xf32>
        %123 = vector.broadcast %cst_53 : f32 to vector<1x1x128xf32>
        %124 = arith.select %116, %122, %123 : vector<1x1x128xi1>, vector<1x1x128xf32>
        %125 = arith.addf %114, %124 : vector<1x1x128xf32>
        %c3_i32 = arith.constant 3 : i32
        %126 = vector.broadcast %c3_i32 : i32 to vector<1x1x128xi32>
        %127 = arith.cmpi eq, %93, %126 : vector<1x1x128xi32>
        %c0_54 = arith.constant 0 : index
        %c0_55 = arith.constant 0 : index
        %128 = vector.load %arg15[%c0_54, %c0_55] : memref<128x128xf32, #tpu.memory_space<vmem>>, vector<128x128xf32>
        %129 = vector.shape_cast %128 : vector<128x128xf32> to vector<1x128x128xf32>
        %cst_56 = arith.constant dense<0.000000e+00> : vector<1xf32>
        %130 = vector.multi_reduction <add>, %129, %cst_56 [1, 2] : vector<1x128x128xf32> to vector<1xf32>
        %131 = vector.shape_cast %130 : vector<1xf32> to vector<1x1x1xf32>
        %132 = vector.extract %131[0, 0, 0] : f32 from vector<1x1x1xf32>
        %cst_57 = arith.constant 0.000000e+00 : f32
        %133 = vector.broadcast %132 : f32 to vector<1x1x128xf32>
        %134 = vector.broadcast %cst_57 : f32 to vector<1x1x128xf32>
        %135 = arith.select %127, %133, %134 : vector<1x1x128xi1>, vector<1x1x128xf32>
        %136 = arith.addf %125, %135 : vector<1x1x128xf32>
        %c0_58 = arith.constant 0 : index
        %c0_59 = arith.constant 0 : index
        %c0_60 = arith.constant 0 : index
        %137 = vector.load %arg11[%c0_58, %c0_59, %c0_60] : memref<1x1x128xf32, #tpu.memory_space<vmem>>, vector<1x1x128xf32>
        tpu.vector_store %arg11[%c0_58, %c0_59, %c0_60], %136 {strides = array<i32>} : memref<1x1x128xf32, #tpu.memory_space<vmem>>, vector<1x1x128xf32>,
      } else {
      }
    } else {
    }
    return
  }
  func.func @transform_0(%arg0: i32, %arg1: i32) -> (i32, i32) {
    %c0_i32 = arith.constant 0 : i32
    %c0_i32_0 = arith.constant 0 : i32
    return %arg0, %c0_i32 : i32, i32
  }
  func.func @transform_1(%arg0: i32, %arg1: i32) -> (i32, i32) {
    %c0_i32 = arith.constant 0 : i32
    %c0_i32_0 = arith.constant 0 : i32
    return %arg1, %c0_i32 : i32, i32
  }
  func.func @transform_2(%arg0: i32, %arg1: i32) -> (i32, i32) {
    %c0_i32 = arith.constant 0 : i32
    %c0_i32_0 = arith.constant 0 : i32
    return %arg0, %c0_i32 : i32, i32
  }
  func.func @transform_3(%arg0: i32, %arg1: i32) -> (i32, i32) {
    %c0_i32 = arith.constant 0 : i32
    %c0_i32_0 = arith.constant 0 : i32
    return %c0_i32, %arg1 : i32, i32
  }
  func.func @transform_4(%arg0: i32, %arg1: i32) -> (i32, i32) {
    %c0_i32 = arith.constant 0 : i32
    %c0_i32_0 = arith.constant 0 : i32
    return %arg0, %c0_i32 : i32, i32
  }
  func.func @transform_5(%arg0: i32, %arg1: i32) -> (i32, i32) {
    %c0_i32 = arith.constant 0 : i32
    %c0_i32_0 = arith.constant 0 : i32
    return %c0_i32, %arg1 : i32, i32
  }
  func.func @transform_6(%arg0: i32, %arg1: i32) -> (i32, i32) {
    %c0_i32 = arith.constant 0 : i32
    %c0_i32_0 = arith.constant 0 : i32
    return %arg0, %c0_i32 : i32, i32
  }
  func.func @transform_7(%arg0: i32, %arg1: i32) -> (i32, i32) {
    %c0_i32 = arith.constant 0 : i32
    %c0_i32_0 = arith.constant 0 : i32
    return %c0_i32, %arg1 : i32, i32
  }
  func.func @transform_8(%arg0: i32, %arg1: i32) -> i32 {
    %c0_i32 = arith.constant 0 : i32
    %c0_i32_0 = arith.constant 0 : i32
    return %c0_i32 : i32
  }
  func.func @transform_9(%arg0: i32, %arg1: i32) -> (i32, i32, i32) {
    %c0_i32 = arith.constant 0 : i32
    %c0_i32_0 = arith.constant 0 : i32
    %c0_i32_1 = arith.constant 0 : i32
    return %arg0, %c0_i32, %c0_i32_0 : i32, i32, i32
  }
}

</mosaic_0001>

<llo_original>
// kernel: tpu_custom_call.1
$region0: #{tpu_custom_call.1}
  #allocation0 [shape = 'u32[]', space=smem, size = 0x4, offset = 0x4, fixed_abs, tag = 'smem constant byte address 0x4 - core index']
  #allocation1 [shape = 'u32[144,128]{1,0:T(1,128)}', space=vmem, size = 0x12000, scoped, tag = 'internal scratch']
  #allocation2 [shape = 'f32[128,128]{1,0:T(8,128)}', space=vmem, size = 0x10000, scoped, tag = 'scratch operand']
  #allocation3 [shape = 'f32[128,128]{1,0:T(8,128)}', space=vmem, size = 0x10000, scoped, tag = 'scratch operand']
  #allocation4 [shape = 'f32[128,128]{1,0:T(8,128)}', space=vmem, size = 0x10000, scoped, tag = 'scratch operand']
  #allocation5 [shape = 'f32[128,128]{1,0:T(8,128)}', space=vmem, size = 0x10000, scoped, tag = 'scratch operand']
  %s0 = inlined_call_operand.vmem [shape: bf16[128,128], index: 0, kind: input, shape index: {}]
  %s1 = inlined_call_operand.vmem [shape: bf16[128,128], index: 1, kind: input, shape index: {}]
  %s2 = inlined_call_operand.vmem [shape: f32[128,1], index: 2, kind: input, shape index: {}]
  %s3 = inlined_call_operand.vmem [shape: f32[1,128], index: 3, kind: input, shape index: {}]
  %s4 = inlined_call_operand.vmem [shape: s32[128,1], index: 4, kind: input, shape index: {}]
  %s5 = inlined_call_operand.vmem [shape: s32[1,128], index: 5, kind: input, shape index: {}]
  %s6 = inlined_call_operand.vmem [shape: f32[128,1], index: 6, kind: input, shape index: {}]
  %s7 = inlined_call_operand.vmem [shape: f32[1,128], index: 7, kind: input, shape index: {}]
  %s8 = inlined_call_operand.vmem [shape: f32[2], index: 8, kind: input, shape index: {}]
  %s9 = inlined_call_operand.hbm [shape: f32[1,1,128], index: 9, kind: output, shape index: {}]
  %s10 = sld [smem:[#allocation0]]
  $region62: #{tpu_custom_call.1} parent=0
    _
  %s12 = ssub.s32 1, %s10
  %s13 = scalar_select 0, %s12, %s10
  $region1: #{tpu_custom_call.1} parent=0
    #allocation6 [shape = 'u8[512]{0}', space=smem, size = 0x200, scoped, tag = 'input window, operand 8, single buffered']
    #allocation7 [shape = 's32[1]{0}', space=sflag, size = 0x4, scoped, tag = 'scoped memory for tpu_custom_call.1']
    #allocation8 [shape = 's32[1]{0}', space=sflag, size = 0x4, scoped, tag = 'scoped memory for tpu_custom_call.1']
    #allocation9 [shape = 'u8[512]{0}', space=vmem, size = 0x400, scoped, tag = 'output window, operand 0, single buffered']
    %14 = vsyncpa [#allocation8], 0
    %15 = vsyncpa [#allocation7], 0
    // Predicated region
    $region2: #{tpu_custom_call.1} parent=1 // pred_check
      _
    $region3: #{tpu_custom_call.1} parent=1 // pred_check_branch
      %17 = sbr.rel (0) target = $region5
    $region4: #{tpu_custom_call.1} parent=1 // pred_region
      _
    $region5: #{tpu_custom_call.1} parent=1 // pred_fallthru
      _
    // Predicated region
    $region6: #{tpu_custom_call.1} parent=1 // pred_check
      _
    $region7: #{tpu_custom_call.1} parent=1 // pred_check_branch
      %19 = sbr.rel (0) target = $region9
    $region8: #{tpu_custom_call.1} parent=1 // pred_region
      _
    $region9: #{tpu_custom_call.1} parent=1 // pred_fallthru
      _
    // Predicated region
    $region10: #{tpu_custom_call.1} parent=1 // pred_check
      _
    $region11: #{tpu_custom_call.1} parent=1 // pred_check_branch
      %21 = sbr.rel (0) target = $region13
    $region12: #{tpu_custom_call.1} parent=1 // pred_region
      _
    $region13: #{tpu_custom_call.1} parent=1 // pred_fallthru
      _
    // Predicated region
    $region14: #{tpu_custom_call.1} parent=1 // pred_check
      _
    $region15: #{tpu_custom_call.1} parent=1 // pred_check_branch
      %23 = sbr.rel (0) target = $region17
    $region16: #{tpu_custom_call.1} parent=1 // pred_region
      _
    $region17: #{tpu_custom_call.1} parent=1 // pred_fallthru
      _
    // Predicated region
    $region18: #{tpu_custom_call.1} parent=1 // pred_check
      _
    $region19: #{tpu_custom_call.1} parent=1 // pred_check_branch
      %25 = sbr.rel (0) target = $region21
    $region20: #{tpu_custom_call.1} parent=1 // pred_region
      _
    $region21: #{tpu_custom_call.1} parent=1 // pred_fallthru
      _
    // Predicated region
    $region22: #{tpu_custom_call.1} parent=1 // pred_check
      _
    $region23: #{tpu_custom_call.1} parent=1 // pred_check_branch
      %27 = sbr.rel (0) target = $region25
    $region24: #{tpu_custom_call.1} parent=1 // pred_region
      _
    $region25: #{tpu_custom_call.1} parent=1 // pred_fallthru
      _
    // Predicated region
    $region26: #{tpu_custom_call.1} parent=1 // pred_check
      _
    $region27: #{tpu_custom_call.1} parent=1 // pred_check_branch
      %29 = sbr.rel (0) target = $region29
    $region28: #{tpu_custom_call.1} parent=1 // pred_region
      _
    $region29: #{tpu_custom_call.1} parent=1 // pred_fallthru
      _
    // Predicated region
    $region30: #{tpu_custom_call.1} parent=1 // pred_check
      _
    $region31: #{tpu_custom_call.1} parent=1 // pred_check_branch
      %31 = sbr.rel (0) target = $region33
    $region32: #{tpu_custom_call.1} parent=1 // pred_region
      _
    $region33: #{tpu_custom_call.1} parent=1 // pred_fallthru
      _
    // Predicated region
    $region34: #{tpu_custom_call.1} parent=1 // pred_check
      _
    $region35: #{tpu_custom_call.1} parent=1 // pred_check_branch
      %33 = sbr.rel (0) target = $region37
    $region36: #{tpu_custom_call.1} parent=1 // pred_region
      %s35 = ssub.s32 16, 16
      %36 = vsyncadd [#allocation8], %s35
      %s38 = sshll.u32 %s8, 4
      %s39 = int_to_ptr.vmem [resolvable:$true] %s38
      %41 = dma.vmem_to_smem %s39, 16, [#allocation6], [#allocation8]
    $region37: #{tpu_custom_call.1} parent=1 // pred_fallthru
      _
    // Predicated region
    $region38: #{tpu_custom_call.1} parent=1 // pred_check
      _
    $region39: #{tpu_custom_call.1} parent=1 // pred_check_branch
      %43 = sbr.rel (0) target = $region41
    $region40: #{tpu_custom_call.1} parent=1 // pred_region
      %44 = dma.done [#allocation8], 16
    $region41: #{tpu_custom_call.1} parent=1 // pred_fallthru
      _
    %45 = sfence
    %p47 = scmp.ge.s32.totalorder 0, 0
    // Predicated region
    $region42: #{tpu_custom_call.1} parent=1 // pred_check
      %p48 = pneg %p47
    $region43: #{tpu_custom_call.1} parent=1 // pred_check_branch
      %50 = sbr.rel (%p48) target = $region45
    $region44: #{tpu_custom_call.1} parent=1 // pred_region
      %p51 = scmp.eq.s32.totalorder 0, 0
      // Predicated region
      $region46: #{tpu_custom_call.1} parent=44 // pred_check
        %p52 = pneg %p51
      $region47: #{tpu_custom_call.1} parent=44 // pred_check_branch
        %54 = sbr.rel (%p52) target = $region49
      $region48: #{tpu_custom_call.1} parent=44 // pred_region
        %55 = vst [vmem:[#allocation2] sm:$0xff] 0.0
        %56 = vst [vmem:[#allocation2 + $0x8] sm:$0xff] 0.0
        %57 = vst [vmem:[#allocation2 + $0x10] sm:$0xff] 0.0
        %58 = vst [vmem:[#allocation2 + $0x18] sm:$0xff] 0.0
        %59 = vst [vmem:[#allocation2 + $0x20] sm:$0xff] 0.0
        %60 = vst [vmem:[#allocation2 + $0x28] sm:$0xff] 0.0
        %61 = vst [vmem:[#allocation2 + $0x30] sm:$0xff] 0.0
        %62 = vst [vmem:[#allocation2 + $0x38] sm:$0xff] 0.0
        %63 = vst [vmem:[#allocation2 + $0x40] sm:$0xff] 0.0
        %64 = vst [vmem:[#allocation2 + $0x48] sm:$0xff] 0.0
        %65 = vst [vmem:[#allocation2 + $0x50] sm:$0xff] 0.0
        %66 = vst [vmem:[#allocation2 + $0x58] sm:$0xff] 0.0
        %67 = vst [vmem:[#allocation2 + $0x60] sm:$0xff] 0.0
        %68 = vst [vmem:[#allocation2 + $0x68] sm:$0xff] 0.0
        %69 = vst [vmem:[#allocation2 + $0x70] sm:$0xff] 0.0
        %70 = vst [vmem:[#allocation2 + $0x78] sm:$0xff] 0.0
        %71 = vst [vmem:[#allocation3] sm:$0xff] 0.0
        %72 = vst [vmem:[#allocation3 + $0x8] sm:$0xff] 0.0
        %73 = vst [vmem:[#allocation3 + $0x10] sm:$0xff] 0.0
        %74 = vst [vmem:[#allocation3 + $0x18] sm:$0xff] 0.0
        %75 = vst [vmem:[#allocation3 + $0x20] sm:$0xff] 0.0
        %76 = vst [vmem:[#allocation3 + $0x28] sm:$0xff] 0.0
        %77 = vst [vmem:[#allocation3 + $0x30] sm:$0xff] 0.0
        %78 = vst [vmem:[#allocation3 + $0x38] sm:$0xff] 0.0
        %79 = vst [vmem:[#allocation3 + $0x40] sm:$0xff] 0.0
        %80 = vst [vmem:[#allocation3 + $0x48] sm:$0xff] 0.0
        %81 = vst [vmem:[#allocation3 + $0x50] sm:$0xff] 0.0
        %82 = vst [vmem:[#allocation3 + $0x58] sm:$0xff] 0.0
        %83 = vst [vmem:[#allocation3 + $0x60] sm:$0xff] 0.0
        %84 = vst [vmem:[#allocation3 + $0x68] sm:$0xff] 0.0
        %85 = vst [vmem:[#allocation3 + $0x70] sm:$0xff] 0.0
        %86 = vst [vmem:[#allocation3 + $0x78] sm:$0xff] 0.0
        %87 = vst [vmem:[#allocation4] sm:$0xff] 0.0
        %88 = vst [vmem:[#allocation4 + $0x8] sm:$0xff] 0.0
        %89 = vst [vmem:[#allocation4 + $0x10] sm:$0xff] 0.0
        %90 = vst [vmem:[#allocation4 + $0x18] sm:$0xff] 0.0
        %91 = vst [vmem:[#allocation4 + $0x20] sm:$0xff] 0.0
        %92 = vst [vmem:[#allocation4 + $0x28] sm:$0xff] 0.0
        %93 = vst [vmem:[#allocation4 + $0x30] sm:$0xff] 0.0
        %94 = vst [vmem:[#allocation4 + $0x38] sm:$0xff] 0.0
        %95 = vst [vmem:[#allocation4 + $0x40] sm:$0xff] 0.0
        %96 = vst [vmem:[#allocation4 + $0x48] sm:$0xff] 0.0
        %97 = vst [vmem:[#allocation4 + $0x50] sm:$0xff] 0.0
        %98 = vst [vmem:[#allocation4 + $0x58] sm:$0xff] 0.0
        %99 = vst [vmem:[#allocation4 + $0x60] sm:$0xff] 0.0
        %100 = vst [vmem:[#allocation4 + $0x68] sm:$0xff] 0.0
        %101 = vst [vmem:[#allocation4 + $0x70] sm:$0xff] 0.0
        %102 = vst [vmem:[#allocation4 + $0x78] sm:$0xff] 0.0
        %103 = vst [vmem:[#allocation5] sm:$0xff] 0.0
        %104 = vst [vmem:[#allocation5 + $0x8] sm:$0xff] 0.0
        %105 = vst [vmem:[#allocation5 + $0x10] sm:$0xff] 0.0
        %106 = vst [vmem:[#allocation5 + $0x18] sm:$0xff] 0.0
        %107 = vst [vmem:[#allocation5 + $0x20] sm:$0xff] 0.0
        %108 = vst [vmem:[#allocation5 + $0x28] sm:$0xff] 0.0
        %109 = vst [vmem:[#allocation5 + $0x30] sm:$0xff] 0.0
        %110 = vst [vmem:[#allocation5 + $0x38] sm:$0xff] 0.0
        %111 = vst [vmem:[#allocation5 + $0x40] sm:$0xff] 0.0
        %112 = vst [vmem:[#allocation5 + $0x48] sm:$0xff] 0.0
        %113 = vst [vmem:[#allocation5 + $0x50] sm:$0xff] 0.0
        %114 = vst [vmem:[#allocation5 + $0x58] sm:$0xff] 0.0
        %115 = vst [vmem:[#allocation5 + $0x60] sm:$0xff] 0.0
        %116 = vst [vmem:[#allocation5 + $0x68] sm:$0xff] 0.0
        %117 = vst [vmem:[#allocation5 + $0x70] sm:$0xff] 0.0
        %118 = vst [vmem:[#allocation5 + $0x78] sm:$0xff] 0.0
      $region49: #{tpu_custom_call.1} parent=44 // pred_fallthru
        _
      %v119 = vld [vmem:[%s0] sm:$0xf]
      %v120 = vld [vmem:[%s0 + $0x4] sm:$0xf]
      %v121 = vld [vmem:[%s0 + $0x8] sm:$0xf]
      %v122 = vld [vmem:[%s0 + $0xc] sm:$0xf]
      %v123 = vld [vmem:[%s0 + $0x10] sm:$0xf]
      %v124 = vld [vmem:[%s0 + $0x14] sm:$0xf]
      %v125 = vld [vmem:[%s0 + $0x18] sm:$0xf]
      %v126 = vld [vmem:[%s0 + $0x1c] sm:$0xf]
      %v127 = vld [vmem:[%s0 + $0x20] sm:$0xf]
      %v128 = vld [vmem:[%s0 + $0x24] sm:$0xf]
      %v129 = vld [vmem:[%s0 + $0x28] sm:$0xf]
      %v130 = vld [vmem:[%s0 + $0x2c] sm:$0xf]
      %v131 = vld [vmem:[%s0 + $0x30] sm:$0xf]
      %v132 = vld [vmem:[%s0 + $0x34] sm:$0xf]
      %v133 = vld [vmem:[%s0 + $0x38] sm:$0xf]
      %v134 = vld [vmem:[%s0 + $0x3c] sm:$0xf]
      %v135 = vld [vmem:[%s1] sm:$0xf]
      %v136 = vld [vmem:[%s1 + $0x4] sm:$0xf]
      %v137 = vld [vmem:[%s1 + $0x8] sm:$0xf]
      %v138 = vld [vmem:[%s1 + $0xc] sm:$0xf]
      %v139 = vld [vmem:[%s1 + $0x10] sm:$0xf]
      %v140 = vld [vmem:[%s1 + $0x14] sm:$0xf]
      %v141 = vld [vmem:[%s1 + $0x18] sm:$0xf]
      %v142 = vld [vmem:[%s1 + $0x1c] sm:$0xf]
      %v143 = vld [vmem:[%s1 + $0x20] sm:$0xf]
      %v144 = vld [vmem:[%s1 + $0x24] sm:$0xf]
      %v145 = vld [vmem:[%s1 + $0x28] sm:$0xf]
      %v146 = vld [vmem:[%s1 + $0x2c] sm:$0xf]
      %v147 = vld [vmem:[%s1 + $0x30] sm:$0xf]
      %v148 = vld [vmem:[%s1 + $0x34] sm:$0xf]
      %v149 = vld [vmem:[%s1 + $0x38] sm:$0xf]
      %v150 = vld [vmem:[%s1 + $0x3c] sm:$0xf]
      %v167 = vunpack.c.l.b16 %v119
      %v168 = vunpack.c.l.b16 %v120
      %v169 = vunpack.c.l.b16 %v121
      %v170 = vunpack.c.l.b16 %v122
      %v171 = vunpack.c.l.b16 %v123
      %v172 = vunpack.c.l.b16 %v124
      %v173 = vunpack.c.l.b16 %v125
      %v174 = vunpack.c.l.b16 %v126
      %v175 = vunpack.c.l.b16 %v127
      %v176 = vunpack.c.l.b16 %v128
      %v177 = vunpack.c.l.b16 %v129
      %v178 = vunpack.c.l.b16 %v130
      %v179 = vunpack.c.l.b16 %v131
      %v180 = vunpack.c.l.b16 %v132
      %v181 = vunpack.c.l.b16 %v133
      %v182 = vunpack.c.l.b16 %v134
      %v183 = vpack.c.b16 %v168, %v167
      %v184 = vpack.c.b16 %v170, %v169
      %v185 = vpack.c.b16 %v172, %v171
      %v186 = vpack.c.b16 %v174, %v173
      %v187 = vpack.c.b16 %v176, %v175
      %v188 = vpack.c.b16 %v178, %v177
      %v189 = vpack.c.b16 %v180, %v179
      %v190 = vpack.c.b16 %v182, %v181
      %v215 = vunpack.c.l.b16 %v135
      %v216 = vunpack.c.l.b16 %v136
      %v217 = vunpack.c.l.b16 %v137
      %v218 = vunpack.c.l.b16 %v138
      %v219 = vunpack.c.l.b16 %v139
      %v220 = vunpack.c.l.b16 %v140
      %v221 = vunpack.c.l.b16 %v141
      %v222 = vunpack.c.l.b16 %v142
      %v223 = vunpack.c.l.b16 %v143
      %v224 = vunpack.c.l.b16 %v144
      %v225 = vunpack.c.l.b16 %v145
      %v226 = vunpack.c.l.b16 %v146
      %v227 = vunpack.c.l.b16 %v147
      %v228 = vunpack.c.l.b16 %v148
      %v229 = vunpack.c.l.b16 %v149
      %v230 = vunpack.c.l.b16 %v150
      %v231 = vpack.c.b16 %v216, %v215
      %v232 = vpack.c.b16 %v218, %v217
      %v233 = vpack.c.b16 %v220, %v219
      %v234 = vpack.c.b16 %v222, %v221
      %v235 = vpack.c.b16 %v224, %v223
      %v236 = vpack.c.b16 %v226, %v225
      %v237 = vpack.c.b16 %v228, %v227
      %v238 = vpack.c.b16 %v230, %v229
      %247 = vmatprep.subr.bf16.mxu0 0
      %248 = vmatpush1.bf16.xpose.msra.mxu0 %v231
      %249 = vmatprep.subr.bf16.mxu0 0
      %250 = vmatpush1.bf16.xpose.msra.mxu0 %v232
      %251 = vmatprep.subr.bf16.mxu0 0
      %252 = vmatpush1.bf16.xpose.msra.mxu0 %v233
      %253 = vmatprep.subr.bf16.mxu0 0
      %254 = vmatpush1.bf16.xpose.msra.mxu0 %v234
      %255 = vmatprep.subr.bf16.mxu0 0
      %256 = vmatpush1.bf16.xpose.msra.mxu0 %v235
      %257 = vmatprep.subr.bf16.mxu0 0
      %258 = vmatpush1.bf16.xpose.msra.mxu0 %v236
      %259 = vmatprep.subr.bf16.mxu0 0
      %260 = vmatpush1.bf16.xpose.msra.mxu0 %v237
      %261 = vmatprep.subr.bf16.mxu0 0
      %262 = vmatpush1.bf16.xpose.msra.mxu0 %v238
      %263 = vmatprep.subr.bf16.mxu0 0
      %264 = vmatpush1.bf16.xpose.msra.mxu0 0
      %265 = vmatprep.subr.bf16.mxu0 0
      %266 = vmatpush1.bf16.xpose.msra.mxu0 0
      %267 = vmatprep.subr.bf16.mxu0 0
      %268 = vmatpush1.bf16.xpose.msra.mxu0 0
      %269 = vmatprep.subr.bf16.mxu0 0
      %270 = vmatpush1.bf16.xpose.msra.mxu0 0
      %271 = vmatprep.subr.bf16.mxu0 0
      %272 = vmatpush1.bf16.xpose.msra.mxu0 0
      %273 = vmatprep.subr.bf16.mxu0 0
      %274 = vmatpush1.bf16.xpose.msra.mxu0 0
      %275 = vmatprep.subr.bf16.mxu0 0
      %276 = vmatpush1.bf16.xpose.msra.mxu0 0
      %277 = vmatprep.subr.bf16.mxu0 0
      %278 = vmatpush1.bf16.xpose.msra.mxu0 0
      %279 = vmatprep.mubr.bf16.mxu0 0
      %280 = vmatmul.mubr.bf16.gmra.mrb[0].mxu0 %v183
      %v281 = vpop.f32.mrb[0].mxu0
      %v282 = vadd.f32 0.0, %v281
      %v283 = vpop.f32.mrb[0].mxu0
      %v284 = vpop.f32.mrb[0].mxu0
      %v285 = vadd.f32 0.0, %v284
      %v286 = vpop.f32.mrb[0].mxu0
      %287 = vmatprep.mubr.bf16.mxu0 0
      %288 = vmatmul.mubr.bf16.gmra.mrb[0].mxu0 %v184
      %v289 = vpop.f32.mrb[0].mxu0
      %v290 = vadd.f32 0.0, %v289
      %v291 = vpop.f32.mrb[0].mxu0
      %v292 = vpop.f32.mrb[0].mxu0
      %v293 = vadd.f32 0.0, %v292
      %v294 = vpop.f32.mrb[0].mxu0
      %295 = vmatprep.mubr.bf16.mxu0 0
      %296 = vmatmul.mubr.bf16.gmra.mrb[0].mxu0 %v185
      %v297 = vpop.f32.mrb[0].mxu0
      %v298 = vadd.f32 0.0, %v297
      %v299 = vpop.f32.mrb[0].mxu0
      %v300 = vpop.f32.mrb[0].mxu0
      %v301 = vadd.f32 0.0, %v300
      %v302 = vpop.f32.mrb[0].mxu0
      %303 = vmatprep.mubr.bf16.mxu0 0
      %304 = vmatmul.mubr.bf16.gmra.mrb[0].mxu0 %v186
      %v305 = vpop.f32.mrb[0].mxu0
      %v306 = vadd.f32 0.0, %v305
      %v307 = vpop.f32.mrb[0].mxu0
      %v308 = vpop.f32.mrb[0].mxu0
      %v309 = vadd.f32 0.0, %v308
      %v310 = vpop.f32.mrb[0].mxu0
      %311 = vmatprep.mubr.bf16.mxu0 0
      %312 = vmatmul.mubr.bf16.gmra.mrb[0].mxu0 %v187
      %v313 = vpop.f32.mrb[0].mxu0
      %v314 = vadd.f32 0.0, %v313
      %v315 = vpop.f32.mrb[0].mxu0
      %v316 = vpop.f32.mrb[0].mxu0
      %v317 = vadd.f32 0.0, %v316
      %v318 = vpop.f32.mrb[0].mxu0
      %319 = vmatprep.mubr.bf16.mxu0 0
      %320 = vmatmul.mubr.bf16.gmra.mrb[0].mxu0 %v188
      %v321 = vpop.f32.mrb[0].mxu0
      %v322 = vadd.f32 0.0, %v321
      %v323 = vpop.f32.mrb[0].mxu0
      %v324 = vpop.f32.mrb[0].mxu0
      %v325 = vadd.f32 0.0, %v324
      %v326 = vpop.f32.mrb[0].mxu0
      %327 = vmatprep.mubr.bf16.mxu0 0
      %328 = vmatmul.mubr.bf16.gmra.mrb[0].mxu0 %v189
      %v329 = vpop.f32.mrb[0].mxu0
      %v330 = vadd.f32 0.0, %v329
      %v331 = vpop.f32.mrb[0].mxu0
      %v332 = vpop.f32.mrb[0].mxu0
      %v333 = vadd.f32 0.0, %v332
      %v334 = vpop.f32.mrb[0].mxu0
      %335 = vmatprep.mubr.bf16.mxu0 0
      %336 = vmatmul.mubr.bf16.gmra.mrb[0].mxu0 %v190
      %v337 = vpop.f32.mrb[0].mxu0
      %v338 = vadd.f32 0.0, %v337
      %v339 = vpop.f32.mrb[0].mxu0
      %v340 = vpop.f32.mrb[0].mxu0
      %v341 = vadd.f32 0.0, %v340
      %v342 = vpop.f32.mrb[0].mxu0
      %343 = vdwg.mxu0
      %v344 = vld [vmem:[%s2] sm:$0xff]
      %v345 = vld [vmem:[%s2 + $0x8] sm:$0xff]
      %v346 = vld [vmem:[%s2 + $0x10] sm:$0xff]
      %v347 = vld [vmem:[%s2 + $0x18] sm:$0xff]
      %v348 = vld [vmem:[%s2 + $0x20] sm:$0xff]
      %v349 = vld [vmem:[%s2 + $0x28] sm:$0xff]
      %v350 = vld [vmem:[%s2 + $0x30] sm:$0xff]
      %v351 = vld [vmem:[%s2 + $0x38] sm:$0xff]
      %v352 = vld [vmem:[%s2 + $0x40] sm:$0xff]
      %v353 = vld [vmem:[%s2 + $0x48] sm:$0xff]
      %v354 = vld [vmem:[%s2 + $0x50] sm:$0xff]
      %v355 = vld [vmem:[%s2 + $0x58] sm:$0xff]
      %v356 = vld [vmem:[%s2 + $0x60] sm:$0xff]
      %v357 = vld [vmem:[%s2 + $0x68] sm:$0xff]
      %v358 = vld [vmem:[%s2 + $0x70] sm:$0xff]
      %v359 = vld [vmem:[%s2 + $0x78] sm:$0xff]
      %v360 = vld [vmem:[%s3] sm:$0x1]
      %362 = vset.pattern.permute.xlu0 0
      %363 = vperm.xlu0 %362, %v344
      %v364 = vpop.permute.xlu0 %363
      %367 = vset.pattern.permute.xlu0 0
      %368 = vperm.xlu0 %367, %v345
      %v369 = vpop.permute.xlu0 %368
      %372 = vset.pattern.permute.xlu0 0
      %373 = vperm.xlu0 %372, %v346
      %v374 = vpop.permute.xlu0 %373
      %377 = vset.pattern.permute.xlu0 0
      %378 = vperm.xlu0 %377, %v347
      %v379 = vpop.permute.xlu0 %378
      %382 = vset.pattern.permute.xlu0 0
      %383 = vperm.xlu0 %382, %v348
      %v384 = vpop.permute.xlu0 %383
      %387 = vset.pattern.permute.xlu0 0
      %388 = vperm.xlu0 %387, %v349
      %v389 = vpop.permute.xlu0 %388
      %392 = vset.pattern.permute.xlu0 0
      %393 = vperm.xlu0 %392, %v350
      %v394 = vpop.permute.xlu0 %393
      %397 = vset.pattern.permute.xlu0 0
      %398 = vperm.xlu0 %397, %v351
      %v399 = vpop.permute.xlu0 %398
      %402 = vset.pattern.permute.xlu0 0
      %403 = vperm.xlu0 %402, %v352
      %v404 = vpop.permute.xlu0 %403
      %407 = vset.pattern.permute.xlu0 0
      %408 = vperm.xlu0 %407, %v353
      %v409 = vpop.permute.xlu0 %408
      %412 = vset.pattern.permute.xlu0 0
      %413 = vperm.xlu0 %412, %v354
      %v414 = vpop.permute.xlu0 %413
      %417 = vset.pattern.permute.xlu0 0
      %418 = vperm.xlu0 %417, %v355
      %v419 = vpop.permute.xlu0 %418
      %422 = vset.pattern.permute.xlu0 0
      %423 = vperm.xlu0 %422, %v356
      %v424 = vpop.permute.xlu0 %423
      %427 = vset.pattern.permute.xlu0 0
      %428 = vperm.xlu0 %427, %v357
      %v429 = vpop.permute.xlu0 %428
      %432 = vset.pattern.permute.xlu0 0
      %433 = vperm.xlu0 %432, %v358
      %v434 = vpop.permute.xlu0 %433
      %437 = vset.pattern.permute.xlu0 0
      %438 = vperm.xlu0 %437, %v359
      %v439 = vpop.permute.xlu0 %438
      %v442 = vlaneseq
      %v443 = vshrl.u32 %v442, 7
      %v444 = vsub.s32 0, %v443
      %v445 = vrot.slane %v360, %v444
      %v447 = vadd.f32 %v364, %v445
      %v448 = vadd.f32 %v369, %v445
      %v449 = vadd.f32 %v374, %v445
      %v450 = vadd.f32 %v379, %v445
      %v451 = vadd.f32 %v384, %v445
      %v452 = vadd.f32 %v389, %v445
      %v453 = vadd.f32 %v394, %v445
      %v454 = vadd.f32 %v399, %v445
      %v455 = vadd.f32 %v404, %v445
      %v456 = vadd.f32 %v409, %v445
      %v457 = vadd.f32 %v414, %v445
      %v458 = vadd.f32 %v419, %v445
      %v459 = vadd.f32 %v424, %v445
      %v460 = vadd.f32 %v429, %v445
      %v461 = vadd.f32 %v434, %v445
      %v462 = vadd.f32 %v439, %v445
      %v463 = vmul.f32 %v282, 2.0
      %v464 = vmul.f32 %v285, 2.0
      %v465 = vmul.f32 %v290, 2.0
      %v466 = vmul.f32 %v293, 2.0
      %v467 = vmul.f32 %v298, 2.0
      %v468 = vmul.f32 %v301, 2.0
      %v469 = vmul.f32 %v306, 2.0
      %v470 = vmul.f32 %v309, 2.0
      %v471 = vmul.f32 %v314, 2.0
      %v472 = vmul.f32 %v317, 2.0
      %v473 = vmul.f32 %v322, 2.0
      %v474 = vmul.f32 %v325, 2.0
      %v475 = vmul.f32 %v330, 2.0
      %v476 = vmul.f32 %v333, 2.0
      %v477 = vmul.f32 %v338, 2.0
      %v478 = vmul.f32 %v341, 2.0
      %v479 = vsub.f32 %v447, %v463
      %v480 = vsub.f32 %v448, %v464
      %v481 = vsub.f32 %v449, %v465
      %v482 = vsub.f32 %v450, %v466
      %v483 = vsub.f32 %v451, %v467
      %v484 = vsub.f32 %v452, %v468
      %v485 = vsub.f32 %v453, %v469
      %v486 = vsub.f32 %v454, %v470
      %v487 = vsub.f32 %v455, %v471
      %v488 = vsub.f32 %v456, %v472
      %v489 = vsub.f32 %v457, %v473
      %v490 = vsub.f32 %v458, %v474
      %v491 = vsub.f32 %v459, %v475
      %v492 = vsub.f32 %v460, %v476
      %v493 = vsub.f32 %v461, %v477
      %v494 = vsub.f32 %v462, %v478
      %v495 = vmax.f32 %v479, 0.0
      %v496 = vmax.f32 %v480, 0.0
      %v497 = vmax.f32 %v481, 0.0
      %v498 = vmax.f32 %v482, 0.0
      %v499 = vmax.f32 %v483, 0.0
      %v500 = vmax.f32 %v484, 0.0
      %v501 = vmax.f32 %v485, 0.0
      %v502 = vmax.f32 %v486, 0.0
      %v503 = vmax.f32 %v487, 0.0
      %v504 = vmax.f32 %v488, 0.0
      %v505 = vmax.f32 %v489, 0.0
      %v506 = vmax.f32 %v490, 0.0
      %v507 = vmax.f32 %v491, 0.0
      %v508 = vmax.f32 %v492, 0.0
      %v509 = vmax.f32 %v493, 0.0
      %v510 = vmax.f32 %v494, 0.0
      %v511 = vrsqrt.pop %v495
      %v512 = vmul.f32 %v495, %v511
      %vm513 = vcmp.eq.f32.partialorder %v495, inf
      %v514 = vsel %vm513, %v495, %v512
      %vm515 = vcmp.eq.f32.partialorder %v495, 0.0
      %v516 = vand.u32 %v495, 2147483648
      %v517 = vsel %vm515, %v516, %v514
      %v518 = vrsqrt.pop %v496
      %v519 = vmul.f32 %v496, %v518
      %vm520 = vcmp.eq.f32.partialorder %v496, inf
      %v521 = vsel %vm520, %v496, %v519
      %vm522 = vcmp.eq.f32.partialorder %v496, 0.0
      %v523 = vand.u32 %v496, 2147483648
      %v524 = vsel %vm522, %v523, %v521
      %v525 = vrsqrt.pop %v497
      %v526 = vmul.f32 %v497, %v525
      %vm527 = vcmp.eq.f32.partialorder %v497, inf
      %v528 = vsel %vm527, %v497, %v526
      %vm529 = vcmp.eq.f32.partialorder %v497, 0.0
      %v530 = vand.u32 %v497, 2147483648
      %v531 = vsel %vm529, %v530, %v528
      %v532 = vrsqrt.pop %v498
      %v533 = vmul.f32 %v498, %v532
      %vm534 = vcmp.eq.f32.partialorder %v498, inf
      %v535 = vsel %vm534, %v498, %v533
      %vm536 = vcmp.eq.f32.partialorder %v498, 0.0
      %v537 = vand.u32 %v498, 2147483648
      %v538 = vsel %vm536, %v537, %v535
      %v539 = vrsqrt.pop %v499
      %v540 = vmul.f32 %v499, %v539
      %vm541 = vcmp.eq.f32.partialorder %v499, inf
      %v542 = vsel %vm541, %v499, %v540
      %vm543 = vcmp.eq.f32.partialorder %v499, 0.0
      %v544 = vand.u32 %v499, 2147483648
      %v545 = vsel %vm543, %v544, %v542
      %v546 = vrsqrt.pop %v500
      %v547 = vmul.f32 %v500, %v546
      %vm548 = vcmp.eq.f32.partialorder %v500, inf
      %v549 = vsel %vm548, %v500, %v547
      %vm550 = vcmp.eq.f32.partialorder %v500, 0.0
      %v551 = vand.u32 %v500, 2147483648
      %v552 = vsel %vm550, %v551, %v549
      %v553 = vrsqrt.pop %v501
      %v554 = vmul.f32 %v501, %v553
      %vm555 = vcmp.eq.f32.partialorder %v501, inf
      %v556 = vsel %vm555, %v501, %v554
      %vm557 = vcmp.eq.f32.partialorder %v501, 0.0
      %v558 = vand.u32 %v501, 2147483648
      %v559 = vsel %vm557, %v558, %v556
      %v560 = vrsqrt.pop %v502
      %v561 = vmul.f32 %v502, %v560
      %vm562 = vcmp.eq.f32.partialorder %v502, inf
      %v563 = vsel %vm562, %v502, %v561
      %vm564 = vcmp.eq.f32.partialorder %v502, 0.0
      %v565 = vand.u32 %v502, 2147483648
      %v566 = vsel %vm564, %v565, %v563
      %v567 = vrsqrt.pop %v503
      %v568 = vmul.f32 %v503, %v567
      %vm569 = vcmp.eq.f32.partialorder %v503, inf
      %v570 = vsel %vm569, %v503, %v568
      %vm571 = vcmp.eq.f32.partialorder %v503, 0.0
      %v572 = vand.u32 %v503, 2147483648
      %v573 = vsel %vm571, %v572, %v570
      %v574 = vrsqrt.pop %v504
      %v575 = vmul.f32 %v504, %v574
      %vm576 = vcmp.eq.f32.partialorder %v504, inf
      %v577 = vsel %vm576, %v504, %v575
      %vm578 = vcmp.eq.f32.partialorder %v504, 0.0
      %v579 = vand.u32 %v504, 2147483648
      %v580 = vsel %vm578, %v579, %v577
      %v581 = vrsqrt.pop %v505
      %v582 = vmul.f32 %v505, %v581
      %vm583 = vcmp.eq.f32.partialorder %v505, inf
      %v584 = vsel %vm583, %v505, %v582
      %vm585 = vcmp.eq.f32.partialorder %v505, 0.0
      %v586 = vand.u32 %v505, 2147483648
      %v587 = vsel %vm585, %v586, %v584
      %v588 = vrsqrt.pop %v506
      %v589 = vmul.f32 %v506, %v588
      %vm590 = vcmp.eq.f32.partialorder %v506, inf
      %v591 = vsel %vm590, %v506, %v589
      %vm592 = vcmp.eq.f32.partialorder %v506, 0.0
      %v593 = vand.u32 %v506, 2147483648
      %v594 = vsel %vm592, %v593, %v591
      %v595 = vrsqrt.pop %v507
      %v596 = vmul.f32 %v507, %v595
      %vm597 = vcmp.eq.f32.partialorder %v507, inf
      %v598 = vsel %vm597, %v507, %v596
      %vm599 = vcmp.eq.f32.partialorder %v507, 0.0
      %v600 = vand.u32 %v507, 2147483648
      %v601 = vsel %vm599, %v600, %v598
      %v602 = vrsqrt.pop %v508
      %v603 = vmul.f32 %v508, %v602
      %vm604 = vcmp.eq.f32.partialorder %v508, inf
      %v605 = vsel %vm604, %v508, %v603
      %vm606 = vcmp.eq.f32.partialorder %v508, 0.0
      %v607 = vand.u32 %v508, 2147483648
      %v608 = vsel %vm606, %v607, %v605
      %v609 = vrsqrt.pop %v509
      %v610 = vmul.f32 %v509, %v609
      %vm611 = vcmp.eq.f32.partialorder %v509, inf
      %v612 = vsel %vm611, %v509, %v610
      %vm613 = vcmp.eq.f32.partialorder %v509, 0.0
      %v614 = vand.u32 %v509, 2147483648
      %v615 = vsel %vm613, %v614, %v612
      %v616 = vrsqrt.pop %v510
      %v617 = vmul.f32 %v510, %v616
      %vm618 = vcmp.eq.f32.partialorder %v510, inf
      %v619 = vsel %vm618, %v510, %v617
      %vm620 = vcmp.eq.f32.partialorder %v510, 0.0
      %v621 = vand.u32 %v510, 2147483648
      %v622 = vsel %vm620, %v621, %v619
      %v623 = vld [vmem:[%s4] sm:$0xff]
      %v624 = vld [vmem:[%s4 + $0x8] sm:$0xff]
      %v625 = vld [vmem:[%s4 + $0x10] sm:$0xff]
      %v626 = vld [vmem:[%s4 + $0x18] sm:$0xff]
      %v627 = vld [vmem:[%s4 + $0x20] sm:$0xff]
      %v628 = vld [vmem:[%s4 + $0x28] sm:$0xff]
      %v629 = vld [vmem:[%s4 + $0x30] sm:$0xff]
      %v630 = vld [vmem:[%s4 + $0x38] sm:$0xff]
      %v631 = vld [vmem:[%s4 + $0x40] sm:$0xff]
      %v632 = vld [vmem:[%s4 + $0x48] sm:$0xff]
      %v633 = vld [vmem:[%s4 + $0x50] sm:$0xff]
      %v634 = vld [vmem:[%s4 + $0x58] sm:$0xff]
      %v635 = vld [vmem:[%s4 + $0x60] sm:$0xff]
      %v636 = vld [vmem:[%s4 + $0x68] sm:$0xff]
      %v637 = vld [vmem:[%s4 + $0x70] sm:$0xff]
      %v638 = vld [vmem:[%s4 + $0x78] sm:$0xff]
      %v639 = vld [vmem:[%s5] sm:$0x1]
      %640 = vset.pattern.permute.xlu0 0
      %641 = vperm.xlu0 %640, %v623
      %v642 = vpop.permute.xlu0 %641
      %643 = vset.pattern.permute.xlu0 0
      %644 = vperm.xlu0 %643, %v624
      %v645 = vpop.permute.xlu0 %644
      %646 = vset.pattern.permute.xlu0 0
      %647 = vperm.xlu0 %646, %v625
      %v648 = vpop.permute.xlu0 %647
      %649 = vset.pattern.permute.xlu0 0
      %650 = vperm.xlu0 %649, %v626
      %v651 = vpop.permute.xlu0 %650
      %652 = vset.pattern.permute.xlu0 0
      %653 = vperm.xlu0 %652, %v627
      %v654 = vpop.permute.xlu0 %653
      %655 = vset.pattern.permute.xlu0 0
      %656 = vperm.xlu0 %655, %v628
      %v657 = vpop.permute.xlu0 %656
      %658 = vset.pattern.permute.xlu0 0
      %659 = vperm.xlu0 %658, %v629
      %v660 = vpop.permute.xlu0 %659
      %661 = vset.pattern.permute.xlu0 0
      %662 = vperm.xlu0 %661, %v630
      %v663 = vpop.permute.xlu0 %662
      %664 = vset.pattern.permute.xlu0 0
      %665 = vperm.xlu0 %664, %v631
      %v666 = vpop.permute.xlu0 %665
      %667 = vset.pattern.permute.xlu0 0
      %668 = vperm.xlu0 %667, %v632
      %v669 = vpop.permute.xlu0 %668
      %670 = vset.pattern.permute.xlu0 0
      %671 = vperm.xlu0 %670, %v633
      %v672 = vpop.permute.xlu0 %671
      %673 = vset.pattern.permute.xlu0 0
      %674 = vperm.xlu0 %673, %v634
      %v675 = vpop.permute.xlu0 %674
      %676 = vset.pattern.permute.xlu0 0
      %677 = vperm.xlu0 %676, %v635
      %v678 = vpop.permute.xlu0 %677
      %679 = vset.pattern.permute.xlu0 0
      %680 = vperm.xlu0 %679, %v636
      %v681 = vpop.permute.xlu0 %680
      %682 = vset.pattern.permute.xlu0 0
      %683 = vperm.xlu0 %682, %v637
      %v684 = vpop.permute.xlu0 %683
      %685 = vset.pattern.permute.xlu0 0
      %686 = vperm.xlu0 %685, %v638
      %v687 = vpop.permute.xlu0 %686
      %v688 = vlaneseq
      %v689 = vshrl.u32 %v688, 7
      %v690 = vsub.s32 0, %v689
      %v691 = vrot.slane %v639, %v690
      %vm692 = vcmp.eq.s32.totalorder %v642, %v691
      %vm693 = vcmp.eq.s32.totalorder %v645, %v691
      %vm694 = vcmp.eq.s32.totalorder %v648, %v691
      %vm695 = vcmp.eq.s32.totalorder %v651, %v691
      %vm696 = vcmp.eq.s32.totalorder %v654, %v691
      %vm697 = vcmp.eq.s32.totalorder %v657, %v691
      %vm698 = vcmp.eq.s32.totalorder %v660, %v691
      %vm699 = vcmp.eq.s32.totalorder %v663, %v691
      %vm700 = vcmp.eq.s32.totalorder %v666, %v691
      %vm701 = vcmp.eq.s32.totalorder %v669, %v691
      %vm702 = vcmp.eq.s32.totalorder %v672, %v691
      %vm703 = vcmp.eq.s32.totalorder %v675, %v691
      %vm704 = vcmp.eq.s32.totalorder %v678, %v691
      %vm705 = vcmp.eq.s32.totalorder %v681, %v691
      %vm706 = vcmp.eq.s32.totalorder %v684, %v691
      %vm707 = vcmp.eq.s32.totalorder %v687, %v691
      %v708 = vsel %vm692, 1, 0
      %v709 = vsel %vm693, 1, 0
      %v710 = vsel %vm694, 1, 0
      %v711 = vsel %vm695, 1, 0
      %v712 = vsel %vm696, 1, 0
      %v713 = vsel %vm697, 1, 0
      %v714 = vsel %vm698, 1, 0
      %v715 = vsel %vm699, 1, 0
      %v716 = vsel %vm700, 1, 0
      %v717 = vsel %vm701, 1, 0
      %v718 = vsel %vm702, 1, 0
      %v719 = vsel %vm703, 1, 0
      %v720 = vsel %vm704, 1, 0
      %v721 = vsel %vm705, 1, 0
      %v722 = vsel %vm706, 1, 0
      %v723 = vsel %vm707, 1, 0
      %v724 = vcvt.s32.f32 %v708
      %v725 = vcvt.s32.f32 %v709
      %v726 = vcvt.s32.f32 %v710
      %v727 = vcvt.s32.f32 %v711
      %v728 = vcvt.s32.f32 %v712
      %v729 = vcvt.s32.f32 %v713
      %v730 = vcvt.s32.f32 %v714
      %v731 = vcvt.s32.f32 %v715
      %v732 = vcvt.s32.f32 %v716
      %v733 = vcvt.s32.f32 %v717
      %v734 = vcvt.s32.f32 %v718
      %v735 = vcvt.s32.f32 %v719
      %v736 = vcvt.s32.f32 %v720
      %v737 = vcvt.s32.f32 %v721
      %v738 = vcvt.s32.f32 %v722
      %v739 = vcvt.s32.f32 %v723
      %v740 = vld [vmem:[%s6] sm:$0xff]
      %v741 = vld [vmem:[%s6 + $0x8] sm:$0xff]
      %v742 = vld [vmem:[%s6 + $0x10] sm:$0xff]
      %v743 = vld [vmem:[%s6 + $0x18] sm:$0xff]
      %v744 = vld [vmem:[%s6 + $0x20] sm:$0xff]
      %v745 = vld [vmem:[%s6 + $0x28] sm:$0xff]
      %v746 = vld [vmem:[%s6 + $0x30] sm:$0xff]
      %v747 = vld [vmem:[%s6 + $0x38] sm:$0xff]
      %v748 = vld [vmem:[%s6 + $0x40] sm:$0xff]
      %v749 = vld [vmem:[%s6 + $0x48] sm:$0xff]
      %v750 = vld [vmem:[%s6 + $0x50] sm:$0xff]
      %v751 = vld [vmem:[%s6 + $0x58] sm:$0xff]
      %v752 = vld [vmem:[%s6 + $0x60] sm:$0xff]
      %v753 = vld [vmem:[%s6 + $0x68] sm:$0xff]
      %v754 = vld [vmem:[%s6 + $0x70] sm:$0xff]
      %v755 = vld [vmem:[%s6 + $0x78] sm:$0xff]
      %v756 = vld [vmem:[%s7] sm:$0x1]
      %758 = vset.pattern.permute.xlu0 0
      %759 = vperm.xlu0 %758, %v740
      %v760 = vpop.permute.xlu0 %759
      %763 = vset.pattern.permute.xlu0 0
      %764 = vperm.xlu0 %763, %v741
      %v765 = vpop.permute.xlu0 %764
      %768 = vset.pattern.permute.xlu0 0
      %769 = vperm.xlu0 %768, %v742
      %v770 = vpop.permute.xlu0 %769
      %773 = vset.pattern.permute.xlu0 0
      %774 = vperm.xlu0 %773, %v743
      %v775 = vpop.permute.xlu0 %774
      %778 = vset.pattern.permute.xlu0 0
      %779 = vperm.xlu0 %778, %v744
      %v780 = vpop.permute.xlu0 %779
      %783 = vset.pattern.permute.xlu0 0
      %784 = vperm.xlu0 %783, %v745
      %v785 = vpop.permute.xlu0 %784
      %788 = vset.pattern.permute.xlu0 0
      %789 = vperm.xlu0 %788, %v746
      %v790 = vpop.permute.xlu0 %789
      %793 = vset.pattern.permute.xlu0 0
      %794 = vperm.xlu0 %793, %v747
      %v795 = vpop.permute.xlu0 %794
      %798 = vset.pattern.permute.xlu0 0
      %799 = vperm.xlu0 %798, %v748
      %v800 = vpop.permute.xlu0 %799
      %803 = vset.pattern.permute.xlu0 0
      %804 = vperm.xlu0 %803, %v749
      %v805 = vpop.permute.xlu0 %804
      %808 = vset.pattern.permute.xlu0 0
      %809 = vperm.xlu0 %808, %v750
      %v810 = vpop.permute.xlu0 %809
      %813 = vset.pattern.permute.xlu0 0
      %814 = vperm.xlu0 %813, %v751
      %v815 = vpop.permute.xlu0 %814
      %818 = vset.pattern.permute.xlu0 0
      %819 = vperm.xlu0 %818, %v752
      %v820 = vpop.permute.xlu0 %819
      %823 = vset.pattern.permute.xlu0 0
      %824 = vperm.xlu0 %823, %v753
      %v825 = vpop.permute.xlu0 %824
      %828 = vset.pattern.permute.xlu0 0
      %829 = vperm.xlu0 %828, %v754
      %v830 = vpop.permute.xlu0 %829
      %833 = vset.pattern.permute.xlu0 0
      %834 = vperm.xlu0 %833, %v755
      %v835 = vpop.permute.xlu0 %834
      %v838 = vlaneseq
      %v839 = vshrl.u32 %v838, 7
      %v840 = vsub.s32 0, %v839
      %v841 = vrot.slane %v756, %v840
      %v843 = vmul.f32 %v760, %v841
      %v844 = vmul.f32 %v765, %v841
      %v845 = vmul.f32 %v770, %v841
      %v846 = vmul.f32 %v775, %v841
      %v847 = vmul.f32 %v780, %v841
      %v848 = vmul.f32 %v785, %v841
      %v849 = vmul.f32 %v790, %v841
      %v850 = vmul.f32 %v795, %v841
      %v851 = vmul.f32 %v800, %v841
      %v852 = vmul.f32 %v805, %v841
      %v853 = vmul.f32 %v810, %v841
      %v854 = vmul.f32 %v815, %v841
      %v855 = vmul.f32 %v820, %v841
      %v856 = vmul.f32 %v825, %v841
      %v857 = vmul.f32 %v830, %v841
      %v858 = vmul.f32 %v835, %v841
      %s859 = sld [smem:[#allocation6]]
      %s860 = sld [smem:[#allocation6 + $0x1]]
      %v861 = vmul.f32 %v724, %v843
      %v862 = vmul.f32 %v725, %v844
      %v863 = vmul.f32 %v726, %v845
      %v864 = vmul.f32 %v727, %v846
      %v865 = vmul.f32 %v728, %v847
      %v866 = vmul.f32 %v729, %v848
      %v867 = vmul.f32 %v730, %v849
      %v868 = vmul.f32 %v731, %v850
      %v869 = vmul.f32 %v732, %v851
      %v870 = vmul.f32 %v733, %v852
      %v871 = vmul.f32 %v734, %v853
      %v872 = vmul.f32 %v735, %v854
      %v873 = vmul.f32 %v736, %v855
      %v874 = vmul.f32 %v737, %v856
      %v875 = vmul.f32 %v738, %v857
      %v876 = vmul.f32 %v739, %v858
      %vm877 = vcmp.gt.f32.partialorder %v495, 0.5625
      %vm878 = vcmp.gt.f32.partialorder %v496, 0.5625
      %vm879 = vcmp.gt.f32.partialorder %v497, 0.5625
      %vm880 = vcmp.gt.f32.partialorder %v498, 0.5625
      %vm881 = vcmp.gt.f32.partialorder %v499, 0.5625
      %vm882 = vcmp.gt.f32.partialorder %v500, 0.5625
      %vm883 = vcmp.gt.f32.partialorder %v501, 0.5625
      %vm884 = vcmp.gt.f32.partialorder %v502, 0.5625
      %vm885 = vcmp.gt.f32.partialorder %v503, 0.5625
      %vm886 = vcmp.gt.f32.partialorder %v504, 0.5625
      %vm887 = vcmp.gt.f32.partialorder %v505, 0.5625
      %vm888 = vcmp.gt.f32.partialorder %v506, 0.5625
      %vm889 = vcmp.gt.f32.partialorder %v507, 0.5625
      %vm890 = vcmp.gt.f32.partialorder %v508, 0.5625
      %vm891 = vcmp.gt.f32.partialorder %v509, 0.5625
      %vm892 = vcmp.gt.f32.partialorder %v510, 0.5625
      %v893 = vsel %vm877, 1, 0
      %v894 = vsel %vm878, 1, 0
      %v895 = vsel %vm879, 1, 0
      %v896 = vsel %vm880, 1, 0
      %v897 = vsel %vm881, 1, 0
      %v898 = vsel %vm882, 1, 0
      %v899 = vsel %vm883, 1, 0
      %v900 = vsel %vm884, 1, 0
      %v901 = vsel %vm885, 1, 0
      %v902 = vsel %vm886, 1, 0
      %v903 = vsel %vm887, 1, 0
      %v904 = vsel %vm888, 1, 0
      %v905 = vsel %vm889, 1, 0
      %v906 = vsel %vm890, 1, 0
      %v907 = vsel %vm891, 1, 0
      %v908 = vsel %vm892, 1, 0
      %v909 = vcvt.s32.f32 %v893
      %v910 = vcvt.s32.f32 %v894
      %v911 = vcvt.s32.f32 %v895
      %v912 = vcvt.s32.f32 %v896
      %v913 = vcvt.s32.f32 %v897
      %v914 = vcvt.s32.f32 %v898
      %v915 = vcvt.s32.f32 %v899
      %v916 = vcvt.s32.f32 %v900
      %v917 = vcvt.s32.f32 %v901
      %v918 = vcvt.s32.f32 %v902
      %v919 = vcvt.s32.f32 %v903
      %v920 = vcvt.s32.f32 %v904
      %v921 = vcvt.s32.f32 %v905
      %v922 = vcvt.s32.f32 %v906
      %v923 = vcvt.s32.f32 %v907
      %v924 = vcvt.s32.f32 %v908
      %v925 = vmul.f32 %v861, %v909
      %v926 = vmul.f32 %v862, %v910
      %v927 = vmul.f32 %v863, %v911
      %v928 = vmul.f32 %v864, %v912
      %v929 = vmul.f32 %v865, %v913
      %v930 = vmul.f32 %v866, %v914
      %v931 = vmul.f32 %v867, %v915
      %v932 = vmul.f32 %v868, %v916
      %v933 = vmul.f32 %v869, %v917
      %v934 = vmul.f32 %v870, %v918
      %v935 = vmul.f32 %v871, %v919
      %v936 = vmul.f32 %v872, %v920
      %v937 = vmul.f32 %v873, %v921
      %v938 = vmul.f32 %v874, %v922
      %v939 = vmul.f32 %v875, %v923
      %v940 = vmul.f32 %v876, %v924
      %s941 = smul.f32 %s859, %s859
      %v942 = vstv %s941
      %vm943 = vcmp.gt.f32.partialorder %v495, %v942
      %vm944 = vcmp.gt.f32.partialorder %v496, %v942
      %vm945 = vcmp.gt.f32.partialorder %v497, %v942
      %vm946 = vcmp.gt.f32.partialorder %v498, %v942
      %vm947 = vcmp.gt.f32.partialorder %v499, %v942
      %vm948 = vcmp.gt.f32.partialorder %v500, %v942
      %vm949 = vcmp.gt.f32.partialorder %v501, %v942
      %vm950 = vcmp.gt.f32.partialorder %v502, %v942
      %vm951 = vcmp.gt.f32.partialorder %v503, %v942
      %vm952 = vcmp.gt.f32.partialorder %v504, %v942
      %vm953 = vcmp.gt.f32.partialorder %v505, %v942
      %vm954 = vcmp.gt.f32.partialorder %v506, %v942
      %vm955 = vcmp.gt.f32.partialorder %v507, %v942
      %vm956 = vcmp.gt.f32.partialorder %v508, %v942
      %vm957 = vcmp.gt.f32.partialorder %v509, %v942
      %vm958 = vcmp.gt.f32.partialorder %v510, %v942
      %v959 = vsel %vm943, 1, 0
      %v960 = vsel %vm944, 1, 0
      %v961 = vsel %vm945, 1, 0
      %v962 = vsel %vm946, 1, 0
      %v963 = vsel %vm947, 1, 0
      %v964 = vsel %vm948, 1, 0
      %v965 = vsel %vm949, 1, 0
      %v966 = vsel %vm950, 1, 0
      %v967 = vsel %vm951, 1, 0
      %v968 = vsel %vm952, 1, 0
      %v969 = vsel %vm953, 1, 0
      %v970 = vsel %vm954, 1, 0
      %v971 = vsel %vm955, 1, 0
      %v972 = vsel %vm956, 1, 0
      %v973 = vsel %vm957, 1, 0
      %v974 = vsel %vm958, 1, 0
      %v975 = vcvt.s32.f32 %v959
      %v976 = vcvt.s32.f32 %v960
      %v977 = vcvt.s32.f32 %v961
      %v978 = vcvt.s32.f32 %v962
      %v979 = vcvt.s32.f32 %v963
      %v980 = vcvt.s32.f32 %v964
      %v981 = vcvt.s32.f32 %v965
      %v982 = vcvt.s32.f32 %v966
      %v983 = vcvt.s32.f32 %v967
      %v984 = vcvt.s32.f32 %v968
      %v985 = vcvt.s32.f32 %v969
      %v986 = vcvt.s32.f32 %v970
      %v987 = vcvt.s32.f32 %v971
      %v988 = vcvt.s32.f32 %v972
      %v989 = vcvt.s32.f32 %v973
      %v990 = vcvt.s32.f32 %v974
      %v991 = vmul.f32 %v925, %v975
      %v992 = vmul.f32 %v926, %v976
      %v993 = vmul.f32 %v927, %v977
      %v994 = vmul.f32 %v928, %v978
      %v995 = vmul.f32 %v929, %v979
      %v996 = vmul.f32 %v930, %v980
      %v997 = vmul.f32 %v931, %v981
      %v998 = vmul.f32 %v932, %v982
      %v999 = vmul.f32 %v933, %v983
      %v1000 = vmul.f32 %v934, %v984
      %v1001 = vmul.f32 %v935, %v985
      %v1002 = vmul.f32 %v936, %v986
      %v1003 = vmul.f32 %v937, %v987
      %v1004 = vmul.f32 %v938, %v988
      %v1005 = vmul.f32 %v939, %v989
      %v1006 = vmul.f32 %v940, %v990
      %v1007 = vsub.f32 1.0, %v724
      %v1008 = vsub.f32 1.0, %v725
      %v1009 = vsub.f32 1.0, %v726
      %v1010 = vsub.f32 1.0, %v727
      %v1011 = vsub.f32 1.0, %v728
      %v1012 = vsub.f32 1.0, %v729
      %v1013 = vsub.f32 1.0, %v730
      %v1014 = vsub.f32 1.0, %v731
      %v1015 = vsub.f32 1.0, %v732
      %v1016 = vsub.f32 1.0, %v733
      %v1017 = vsub.f32 1.0, %v734
      %v1018 = vsub.f32 1.0, %v735
      %v1019 = vsub.f32 1.0, %v736
      %v1020 = vsub.f32 1.0, %v737
      %v1021 = vsub.f32 1.0, %v738
      %v1022 = vsub.f32 1.0, %v739
      %v1023 = vmul.f32 %v1007, %v843
      %v1024 = vmul.f32 %v1008, %v844
      %v1025 = vmul.f32 %v1009, %v845
      %v1026 = vmul.f32 %v1010, %v846
      %v1027 = vmul.f32 %v1011, %v847
      %v1028 = vmul.f32 %v1012, %v848
      %v1029 = vmul.f32 %v1013, %v849
      %v1030 = vmul.f32 %v1014, %v850
      %v1031 = vmul.f32 %v1015, %v851
      %v1032 = vmul.f32 %v1016, %v852
      %v1033 = vmul.f32 %v1017, %v853
      %v1034 = vmul.f32 %v1018, %v854
      %v1035 = vmul.f32 %v1019, %v855
      %v1036 = vmul.f32 %v1020, %v856
      %v1037 = vmul.f32 %v1021, %v857
      %v1038 = vmul.f32 %v1022, %v858
      %vm1039 = vcmp.lt.f32.partialorder %v495, 0.25
      %vm1040 = vcmp.lt.f32.partialorder %v496, 0.25
      %vm1041 = vcmp.lt.f32.partialorder %v497, 0.25
      %vm1042 = vcmp.lt.f32.partialorder %v498, 0.25
      %vm1043 = vcmp.lt.f32.partialorder %v499, 0.25
      %vm1044 = vcmp.lt.f32.partialorder %v500, 0.25
      %vm1045 = vcmp.lt.f32.partialorder %v501, 0.25
      %vm1046 = vcmp.lt.f32.partialorder %v502, 0.25
      %vm1047 = vcmp.lt.f32.partialorder %v503, 0.25
      %vm1048 = vcmp.lt.f32.partialorder %v504, 0.25
      %vm1049 = vcmp.lt.f32.partialorder %v505, 0.25
      %vm1050 = vcmp.lt.f32.partialorder %v506, 0.25
      %vm1051 = vcmp.lt.f32.partialorder %v507, 0.25
      %vm1052 = vcmp.lt.f32.partialorder %v508, 0.25
      %vm1053 = vcmp.lt.f32.partialorder %v509, 0.25
      %vm1054 = vcmp.lt.f32.partialorder %v510, 0.25
      %v1055 = vsel %vm1039, 1, 0
      %v1056 = vsel %vm1040, 1, 0
      %v1057 = vsel %vm1041, 1, 0
      %v1058 = vsel %vm1042, 1, 0
      %v1059 = vsel %vm1043, 1, 0
      %v1060 = vsel %vm1044, 1, 0
      %v1061 = vsel %vm1045, 1, 0
      %v1062 = vsel %vm1046, 1, 0
      %v1063 = vsel %vm1047, 1, 0
      %v1064 = vsel %vm1048, 1, 0
      %v1065 = vsel %vm1049, 1, 0
      %v1066 = vsel %vm1050, 1, 0
      %v1067 = vsel %vm1051, 1, 0
      %v1068 = vsel %vm1052, 1, 0
      %v1069 = vsel %vm1053, 1, 0
      %v1070 = vsel %vm1054, 1, 0
      %v1071 = vcvt.s32.f32 %v1055
      %v1072 = vcvt.s32.f32 %v1056
      %v1073 = vcvt.s32.f32 %v1057
      %v1074 = vcvt.s32.f32 %v1058
      %v1075 = vcvt.s32.f32 %v1059
      %v1076 = vcvt.s32.f32 %v1060
      %v1077 = vcvt.s32.f32 %v1061
      %v1078 = vcvt.s32.f32 %v1062
      %v1079 = vcvt.s32.f32 %v1063
      %v1080 = vcvt.s32.f32 %v1064
      %v1081 = vcvt.s32.f32 %v1065
      %v1082 = vcvt.s32.f32 %v1066
      %v1083 = vcvt.s32.f32 %v1067
      %v1084 = vcvt.s32.f32 %v1068
      %v1085 = vcvt.s32.f32 %v1069
      %v1086 = vcvt.s32.f32 %v1070
      %v1087 = vmul.f32 %v1023, %v1071
      %v1088 = vmul.f32 %v1024, %v1072
      %v1089 = vmul.f32 %v1025, %v1073
      %v1090 = vmul.f32 %v1026, %v1074
      %v1091 = vmul.f32 %v1027, %v1075
      %v1092 = vmul.f32 %v1028, %v1076
      %v1093 = vmul.f32 %v1029, %v1077
      %v1094 = vmul.f32 %v1030, %v1078
      %v1095 = vmul.f32 %v1031, %v1079
      %v1096 = vmul.f32 %v1032, %v1080
      %v1097 = vmul.f32 %v1033, %v1081
      %v1098 = vmul.f32 %v1034, %v1082
      %v1099 = vmul.f32 %v1035, %v1083
      %v1100 = vmul.f32 %v1036, %v1084
      %v1101 = vmul.f32 %v1037, %v1085
      %v1102 = vmul.f32 %v1038, %v1086
      %s1103 = smul.f32 %s860, %s860
      %v1104 = vstv %s1103
      %vm1105 = vcmp.lt.f32.partialorder %v495, %v1104
      %vm1106 = vcmp.lt.f32.partialorder %v496, %v1104
      %vm1107 = vcmp.lt.f32.partialorder %v497, %v1104
      %vm1108 = vcmp.lt.f32.partialorder %v498, %v1104
      %vm1109 = vcmp.lt.f32.partialorder %v499, %v1104
      %vm1110 = vcmp.lt.f32.partialorder %v500, %v1104
      %vm1111 = vcmp.lt.f32.partialorder %v501, %v1104
      %vm1112 = vcmp.lt.f32.partialorder %v502, %v1104
      %vm1113 = vcmp.lt.f32.partialorder %v503, %v1104
      %vm1114 = vcmp.lt.f32.partialorder %v504, %v1104
      %vm1115 = vcmp.lt.f32.partialorder %v505, %v1104
      %vm1116 = vcmp.lt.f32.partialorder %v506, %v1104
      %vm1117 = vcmp.lt.f32.partialorder %v507, %v1104
      %vm1118 = vcmp.lt.f32.partialorder %v508, %v1104
      %vm1119 = vcmp.lt.f32.partialorder %v509, %v1104
      %vm1120 = vcmp.lt.f32.partialorder %v510, %v1104
      %v1121 = vsel %vm1105, 1, 0
      %v1122 = vsel %vm1106, 1, 0
      %v1123 = vsel %vm1107, 1, 0
      %v1124 = vsel %vm1108, 1, 0
      %v1125 = vsel %vm1109, 1, 0
      %v1126 = vsel %vm1110, 1, 0
      %v1127 = vsel %vm1111, 1, 0
      %v1128 = vsel %vm1112, 1, 0
      %v1129 = vsel %vm1113, 1, 0
      %v1130 = vsel %vm1114, 1, 0
      %v1131 = vsel %vm1115, 1, 0
      %v1132 = vsel %vm1116, 1, 0
      %v1133 = vsel %vm1117, 1, 0
      %v1134 = vsel %vm1118, 1, 0
      %v1135 = vsel %vm1119, 1, 0
      %v1136 = vsel %vm1120, 1, 0
      %v1137 = vcvt.s32.f32 %v1121
      %v1138 = vcvt.s32.f32 %v1122
      %v1139 = vcvt.s32.f32 %v1123
      %v1140 = vcvt.s32.f32 %v1124
      %v1141 = vcvt.s32.f32 %v1125
      %v1142 = vcvt.s32.f32 %v1126
      %v1143 = vcvt.s32.f32 %v1127
      %v1144 = vcvt.s32.f32 %v1128
      %v1145 = vcvt.s32.f32 %v1129
      %v1146 = vcvt.s32.f32 %v1130
      %v1147 = vcvt.s32.f32 %v1131
      %v1148 = vcvt.s32.f32 %v1132
      %v1149 = vcvt.s32.f32 %v1133
      %v1150 = vcvt.s32.f32 %v1134
      %v1151 = vcvt.s32.f32 %v1135
      %v1152 = vcvt.s32.f32 %v1136
      %v1153 = vmul.f32 %v1087, %v1137
      %v1154 = vmul.f32 %v1088, %v1138
      %v1155 = vmul.f32 %v1089, %v1139
      %v1156 = vmul.f32 %v1090, %v1140
      %v1157 = vmul.f32 %v1091, %v1141
      %v1158 = vmul.f32 %v1092, %v1142
      %v1159 = vmul.f32 %v1093, %v1143
      %v1160 = vmul.f32 %v1094, %v1144
      %v1161 = vmul.f32 %v1095, %v1145
      %v1162 = vmul.f32 %v1096, %v1146
      %v1163 = vmul.f32 %v1097, %v1147
      %v1164 = vmul.f32 %v1098, %v1148
      %v1165 = vmul.f32 %v1099, %v1149
      %v1166 = vmul.f32 %v1100, %v1150
      %v1167 = vmul.f32 %v1101, %v1151
      %v1168 = vmul.f32 %v1102, %v1152
      %v1169 = vstv %s859
      %v1170 = vsub.f32 %v517, %v1169
      %v1171 = vsub.f32 %v524, %v1169
      %v1172 = vsub.f32 %v531, %v1169
      %v1173 = vsub.f32 %v538, %v1169
      %v1174 = vsub.f32 %v545, %v1169
      %v1175 = vsub.f32 %v552, %v1169
      %v1176 = vsub.f32 %v559, %v1169
      %v1177 = vsub.f32 %v566, %v1169
      %v1178 = vsub.f32 %v573, %v1169
      %v1179 = vsub.f32 %v580, %v1169
      %v1180 = vsub.f32 %v587, %v1169
      %v1181 = vsub.f32 %v594, %v1169
      %v1182 = vsub.f32 %v601, %v1169
      %v1183 = vsub.f32 %v608, %v1169
      %v1184 = vsub.f32 %v615, %v1169
      %v1185 = vsub.f32 %v622, %v1169
      %v1186 = vmul.f32 %v1170, %v991
      %v1187 = vmul.f32 %v1171, %v992
      %v1188 = vmul.f32 %v1172, %v993
      %v1189 = vmul.f32 %v1173, %v994
      %v1190 = vmul.f32 %v1174, %v995
      %v1191 = vmul.f32 %v1175, %v996
      %v1192 = vmul.f32 %v1176, %v997
      %v1193 = vmul.f32 %v1177, %v998
      %v1194 = vmul.f32 %v1178, %v999
      %v1195 = vmul.f32 %v1179, %v1000
      %v1196 = vmul.f32 %v1180, %v1001
      %v1197 = vmul.f32 %v1181, %v1002
      %v1198 = vmul.f32 %v1182, %v1003
      %v1199 = vmul.f32 %v1183, %v1004
      %v1200 = vmul.f32 %v1184, %v1005
      %v1201 = vmul.f32 %v1185, %v1006
      %v1202 = vstv %s860
      %v1203 = vsub.f32 %v1202, %v517
      %v1204 = vsub.f32 %v1202, %v524
      %v1205 = vsub.f32 %v1202, %v531
      %v1206 = vsub.f32 %v1202, %v538
      %v1207 = vsub.f32 %v1202, %v545
      %v1208 = vsub.f32 %v1202, %v552
      %v1209 = vsub.f32 %v1202, %v559
      %v1210 = vsub.f32 %v1202, %v566
      %v1211 = vsub.f32 %v1202, %v573
      %v1212 = vsub.f32 %v1202, %v580
      %v1213 = vsub.f32 %v1202, %v587
      %v1214 = vsub.f32 %v1202, %v594
      %v1215 = vsub.f32 %v1202, %v601
      %v1216 = vsub.f32 %v1202, %v608
      %v1217 = vsub.f32 %v1202, %v615
      %v1218 = vsub.f32 %v1202, %v622
      %v1219 = vmul.f32 %v1203, %v1153
      %v1220 = vmul.f32 %v1204, %v1154
      %v1221 = vmul.f32 %v1205, %v1155
      %v1222 = vmul.f32 %v1206, %v1156
      %v1223 = vmul.f32 %v1207, %v1157
      %v1224 = vmul.f32 %v1208, %v1158
      %v1225 = vmul.f32 %v1209, %v1159
      %v1226 = vmul.f32 %v1210, %v1160
      %v1227 = vmul.f32 %v1211, %v1161
      %v1228 = vmul.f32 %v1212, %v1162
      %v1229 = vmul.f32 %v1213, %v1163
      %v1230 = vmul.f32 %v1214, %v1164
      %v1231 = vmul.f32 %v1215, %v1165
      %v1232 = vmul.f32 %v1216, %v1166
      %v1233 = vmul.f32 %v1217, %v1167
      %v1234 = vmul.f32 %v1218, %v1168
      %s1235 = scalar_select %p51, 1, 0
      %s1236 = scvt.s32.f32 %s1235
      %s1237 = ssub.f32 2.0, %s1236
      %v1238 = vld [vmem:[#allocation2] sm:$0xff]
      %v1239 = vld [vmem:[#allocation2 + $0x8] sm:$0xff]
      %v1240 = vld [vmem:[#allocation2 + $0x10] sm:$0xff]
      %v1241 = vld [vmem:[#allocation2 + $0x18] sm:$0xff]
      %v1242 = vld [vmem:[#allocation2 + $0x20] sm:$0xff]
      %v1243 = vld [vmem:[#allocation2 + $0x28] sm:$0xff]
      %v1244 = vld [vmem:[#allocation2 + $0x30] sm:$0xff]
      %v1245 = vld [vmem:[#allocation2 + $0x38] sm:$0xff]
      %v1246 = vld [vmem:[#allocation2 + $0x40] sm:$0xff]
      %v1247 = vld [vmem:[#allocation2 + $0x48] sm:$0xff]
      %v1248 = vld [vmem:[#allocation2 + $0x50] sm:$0xff]
      %v1249 = vld [vmem:[#allocation2 + $0x58] sm:$0xff]
      %v1250 = vld [vmem:[#allocation2 + $0x60] sm:$0xff]
      %v1251 = vld [vmem:[#allocation2 + $0x68] sm:$0xff]
      %v1252 = vld [vmem:[#allocation2 + $0x70] sm:$0xff]
      %v1253 = vld [vmem:[#allocation2 + $0x78] sm:$0xff]
      %v1254 = vstv %s1237
      %v1255 = vmul.f32 %v1254, %v1186
      %v1256 = vmul.f32 %v1254, %v1187
      %v1257 = vmul.f32 %v1254, %v1188
      %v1258 = vmul.f32 %v1254, %v1189
      %v1259 = vmul.f32 %v1254, %v1190
      %v1260 = vmul.f32 %v1254, %v1191
      %v1261 = vmul.f32 %v1254, %v1192
      %v1262 = vmul.f32 %v1254, %v1193
      %v1263 = vmul.f32 %v1254, %v1194
      %v1264 = vmul.f32 %v1254, %v1195
      %v1265 = vmul.f32 %v1254, %v1196
      %v1266 = vmul.f32 %v1254, %v1197
      %v1267 = vmul.f32 %v1254, %v1198
      %v1268 = vmul.f32 %v1254, %v1199
      %v1269 = vmul.f32 %v1254, %v1200
      %v1270 = vmul.f32 %v1254, %v1201
      %v1271 = vadd.f32 %v1238, %v1255
      %v1272 = vadd.f32 %v1239, %v1256
      %v1273 = vadd.f32 %v1240, %v1257
      %v1274 = vadd.f32 %v1241, %v1258
      %v1275 = vadd.f32 %v1242, %v1259
      %v1276 = vadd.f32 %v1243, %v1260
      %v1277 = vadd.f32 %v1244, %v1261
      %v1278 = vadd.f32 %v1245, %v1262
      %v1279 = vadd.f32 %v1246, %v1263
      %v1280 = vadd.f32 %v1247, %v1264
      %v1281 = vadd.f32 %v1248, %v1265
      %v1282 = vadd.f32 %v1249, %v1266
      %v1283 = vadd.f32 %v1250, %v1267
      %v1284 = vadd.f32 %v1251, %v1268
      %v1285 = vadd.f32 %v1252, %v1269
      %v1286 = vadd.f32 %v1253, %v1270
      %1287 = vst [vmem:[#allocation2] sm:$0xff] %v1271
      %1288 = vst [vmem:[#allocation2 + $0x8] sm:$0xff] %v1272
      %1289 = vst [vmem:[#allocation2 + $0x10] sm:$0xff] %v1273
      %1290 = vst [vmem:[#allocation2 + $0x18] sm:$0xff] %v1274
      %1291 = vst [vmem:[#allocation2 + $0x20] sm:$0xff] %v1275
      %1292 = vst [vmem:[#allocation2 + $0x28] sm:$0xff] %v1276
      %1293 = vst [vmem:[#allocation2 + $0x30] sm:$0xff] %v1277
      %1294 = vst [vmem:[#allocation2 + $0x38] sm:$0xff] %v1278
      %1295 = vst [vmem:[#allocation2 + $0x40] sm:$0xff] %v1279
      %1296 = vst [vmem:[#allocation2 + $0x48] sm:$0xff] %v1280
      %1297 = vst [vmem:[#allocation2 + $0x50] sm:$0xff] %v1281
      %1298 = vst [vmem:[#allocation2 + $0x58] sm:$0xff] %v1282
      %1299 = vst [vmem:[#allocation2 + $0x60] sm:$0xff] %v1283
      %1300 = vst [vmem:[#allocation2 + $0x68] sm:$0xff] %v1284
      %1301 = vst [vmem:[#allocation2 + $0x70] sm:$0xff] %v1285
      %1302 = vst [vmem:[#allocation2 + $0x78] sm:$0xff] %v1286
      %v1303 = vld [vmem:[#allocation3] sm:$0xff]
      %v1304 = vld [vmem:[#allocation3 + $0x8] sm:$0xff]
      %v1305 = vld [vmem:[#allocation3 + $0x10] sm:$0xff]
      %v1306 = vld [vmem:[#allocation3 + $0x18] sm:$0xff]
      %v1307 = vld [vmem:[#allocation3 + $0x20] sm:$0xff]
      %v1308 = vld [vmem:[#allocation3 + $0x28] sm:$0xff]
      %v1309 = vld [vmem:[#allocation3 + $0x30] sm:$0xff]
      %v1310 = vld [vmem:[#allocation3 + $0x38] sm:$0xff]
      %v1311 = vld [vmem:[#allocation3 + $0x40] sm:$0xff]
      %v1312 = vld [vmem:[#allocation3 + $0x48] sm:$0xff]
      %v1313 = vld [vmem:[#allocation3 + $0x50] sm:$0xff]
      %v1314 = vld [vmem:[#allocation3 + $0x58] sm:$0xff]
      %v1315 = vld [vmem:[#allocation3 + $0x60] sm:$0xff]
      %v1316 = vld [vmem:[#allocation3 + $0x68] sm:$0xff]
      %v1317 = vld [vmem:[#allocation3 + $0x70] sm:$0xff]
      %v1318 = vld [vmem:[#allocation3 + $0x78] sm:$0xff]
      %v1319 = vmul.f32 %v1254, %v991
      %v1320 = vmul.f32 %v1254, %v992
      %v1321 = vmul.f32 %v1254, %v993
      %v1322 = vmul.f32 %v1254, %v994
      %v1323 = vmul.f32 %v1254, %v995
      %v1324 = vmul.f32 %v1254, %v996
      %v1325 = vmul.f32 %v1254, %v997
      %v1326 = vmul.f32 %v1254, %v998
      %v1327 = vmul.f32 %v1254, %v999
      %v1328 = vmul.f32 %v1254, %v1000
      %v1329 = vmul.f32 %v1254, %v1001
      %v1330 = vmul.f32 %v1254, %v1002
      %v1331 = vmul.f32 %v1254, %v1003
      %v1332 = vmul.f32 %v1254, %v1004
      %v1333 = vmul.f32 %v1254, %v1005
      %v1334 = vmul.f32 %v1254, %v1006
      %v1335 = vadd.f32 %v1303, %v1319
      %v1336 = vadd.f32 %v1304, %v1320
      %v1337 = vadd.f32 %v1305, %v1321
      %v1338 = vadd.f32 %v1306, %v1322
      %v1339 = vadd.f32 %v1307, %v1323
      %v1340 = vadd.f32 %v1308, %v1324
      %v1341 = vadd.f32 %v1309, %v1325
      %v1342 = vadd.f32 %v1310, %v1326
      %v1343 = vadd.f32 %v1311, %v1327
      %v1344 = vadd.f32 %v1312, %v1328
      %v1345 = vadd.f32 %v1313, %v1329
      %v1346 = vadd.f32 %v1314, %v1330
      %v1347 = vadd.f32 %v1315, %v1331
      %v1348 = vadd.f32 %v1316, %v1332
      %v1349 = vadd.f32 %v1317, %v1333
      %v1350 = vadd.f32 %v1318, %v1334
      %1351 = vst [vmem:[#allocation3] sm:$0xff] %v1335
      %1352 = vst [vmem:[#allocation3 + $0x8] sm:$0xff] %v1336
      %1353 = vst [vmem:[#allocation3 + $0x10] sm:$0xff] %v1337
      %1354 = vst [vmem:[#allocation3 + $0x18] sm:$0xff] %v1338
      %1355 = vst [vmem:[#allocation3 + $0x20] sm:$0xff] %v1339
      %1356 = vst [vmem:[#allocation3 + $0x28] sm:$0xff] %v1340
      %1357 = vst [vmem:[#allocation3 + $0x30] sm:$0xff] %v1341
      %1358 = vst [vmem:[#allocation3 + $0x38] sm:$0xff] %v1342
      %1359 = vst [vmem:[#allocation3 + $0x40] sm:$0xff] %v1343
      %1360 = vst [vmem:[#allocation3 + $0x48] sm:$0xff] %v1344
      %1361 = vst [vmem:[#allocation3 + $0x50] sm:$0xff] %v1345
      %1362 = vst [vmem:[#allocation3 + $0x58] sm:$0xff] %v1346
      %1363 = vst [vmem:[#allocation3 + $0x60] sm:$0xff] %v1347
      %1364 = vst [vmem:[#allocation3 + $0x68] sm:$0xff] %v1348
      %1365 = vst [vmem:[#allocation3 + $0x70] sm:$0xff] %v1349
      %1366 = vst [vmem:[#allocation3 + $0x78] sm:$0xff] %v1350
      %v1367 = vld [vmem:[#allocation4] sm:$0xff]
      %v1368 = vld [vmem:[#allocation4 + $0x8] sm:$0xff]
      %v1369 = vld [vmem:[#allocation4 + $0x10] sm:$0xff]
      %v1370 = vld [vmem:[#allocation4 + $0x18] sm:$0xff]
      %v1371 = vld [vmem:[#allocation4 + $0x20] sm:$0xff]
      %v1372 = vld [vmem:[#allocation4 + $0x28] sm:$0xff]
      %v1373 = vld [vmem:[#allocation4 + $0x30] sm:$0xff]
      %v1374 = vld [vmem:[#allocation4 + $0x38] sm:$0xff]
      %v1375 = vld [vmem:[#allocation4 + $0x40] sm:$0xff]
      %v1376 = vld [vmem:[#allocation4 + $0x48] sm:$0xff]
      %v1377 = vld [vmem:[#allocation4 + $0x50] sm:$0xff]
      %v1378 = vld [vmem:[#allocation4 + $0x58] sm:$0xff]
      %v1379 = vld [vmem:[#allocation4 + $0x60] sm:$0xff]
      %v1380 = vld [vmem:[#allocation4 + $0x68] sm:$0xff]
      %v1381 = vld [vmem:[#allocation4 + $0x70] sm:$0xff]
      %v1382 = vld [vmem:[#allocation4 + $0x78] sm:$0xff]
      %v1383 = vmul.f32 %v1254, %v1219
      %v1384 = vmul.f32 %v1254, %v1220
      %v1385 = vmul.f32 %v1254, %v1221
      %v1386 = vmul.f32 %v1254, %v1222
      %v1387 = vmul.f32 %v1254, %v1223
      %v1388 = vmul.f32 %v1254, %v1224
      %v1389 = vmul.f32 %v1254, %v1225
      %v1390 = vmul.f32 %v1254, %v1226
      %v1391 = vmul.f32 %v1254, %v1227
      %v1392 = vmul.f32 %v1254, %v1228
      %v1393 = vmul.f32 %v1254, %v1229
      %v1394 = vmul.f32 %v1254, %v1230
      %v1395 = vmul.f32 %v1254, %v1231
      %v1396 = vmul.f32 %v1254, %v1232
      %v1397 = vmul.f32 %v1254, %v1233
      %v1398 = vmul.f32 %v1254, %v1234
      %v1399 = vadd.f32 %v1367, %v1383
      %v1400 = vadd.f32 %v1368, %v1384
      %v1401 = vadd.f32 %v1369, %v1385
      %v1402 = vadd.f32 %v1370, %v1386
      %v1403 = vadd.f32 %v1371, %v1387
      %v1404 = vadd.f32 %v1372, %v1388
      %v1405 = vadd.f32 %v1373, %v1389
      %v1406 = vadd.f32 %v1374, %v1390
      %v1407 = vadd.f32 %v1375, %v1391
      %v1408 = vadd.f32 %v1376, %v1392
      %v1409 = vadd.f32 %v1377, %v1393
      %v1410 = vadd.f32 %v1378, %v1394
      %v1411 = vadd.f32 %v1379, %v1395
      %v1412 = vadd.f32 %v1380, %v1396
      %v1413 = vadd.f32 %v1381, %v1397
      %v1414 = vadd.f32 %v1382, %v1398
      %1415 = vst [vmem:[#allocation4] sm:$0xff] %v1399
      %1416 = vst [vmem:[#allocation4 + $0x8] sm:$0xff] %v1400
      %1417 = vst [vmem:[#allocation4 + $0x10] sm:$0xff] %v1401
      %1418 = vst [vmem:[#allocation4 + $0x18] sm:$0xff] %v1402
      %1419 = vst [vmem:[#allocation4 + $0x20] sm:$0xff] %v1403
      %1420 = vst [vmem:[#allocation4 + $0x28] sm:$0xff] %v1404
      %1421 = vst [vmem:[#allocation4 + $0x30] sm:$0xff] %v1405
      %1422 = vst [vmem:[#allocation4 + $0x38] sm:$0xff] %v1406
      %1423 = vst [vmem:[#allocation4 + $0x40] sm:$0xff] %v1407
      %1424 = vst [vmem:[#allocation4 + $0x48] sm:$0xff] %v1408
      %1425 = vst [vmem:[#allocation4 + $0x50] sm:$0xff] %v1409
      %1426 = vst [vmem:[#allocation4 + $0x58] sm:$0xff] %v1410
      %1427 = vst [vmem:[#allocation4 + $0x60] sm:$0xff] %v1411
      %1428 = vst [vmem:[#allocation4 + $0x68] sm:$0xff] %v1412
      %1429 = vst [vmem:[#allocation4 + $0x70] sm:$0xff] %v1413
      %1430 = vst [vmem:[#allocation4 + $0x78] sm:$0xff] %v1414
      %v1431 = vld [vmem:[#allocation5] sm:$0xff]
      %v1432 = vld [vmem:[#allocation5 + $0x8] sm:$0xff]
      %v1433 = vld [vmem:[#allocation5 + $0x10] sm:$0xff]
      %v1434 = vld [vmem:[#allocation5 + $0x18] sm:$0xff]
      %v1435 = vld [vmem:[#allocation5 + $0x20] sm:$0xff]
      %v1436 = vld [vmem:[#allocation5 + $0x28] sm:$0xff]
      %v1437 = vld [vmem:[#allocation5 + $0x30] sm:$0xff]
      %v1438 = vld [vmem:[#allocation5 + $0x38] sm:$0xff]
      %v1439 = vld [vmem:[#allocation5 + $0x40] sm:$0xff]
      %v1440 = vld [vmem:[#allocation5 + $0x48] sm:$0xff]
      %v1441 = vld [vmem:[#allocation5 + $0x50] sm:$0xff]
      %v1442 = vld [vmem:[#allocation5 + $0x58] sm:$0xff]
      %v1443 = vld [vmem:[#allocation5 + $0x60] sm:$0xff]
      %v1444 = vld [vmem:[#allocation5 + $0x68] sm:$0xff]
      %v1445 = vld [vmem:[#allocation5 + $0x70] sm:$0xff]
      %v1446 = vld [vmem:[#allocation5 + $0x78] sm:$0xff]
      %v1447 = vmul.f32 %v1254, %v1153
      %v1448 = vmul.f32 %v1254, %v1154
      %v1449 = vmul.f32 %v1254, %v1155
      %v1450 = vmul.f32 %v1254, %v1156
      %v1451 = vmul.f32 %v1254, %v1157
      %v1452 = vmul.f32 %v1254, %v1158
      %v1453 = vmul.f32 %v1254, %v1159
      %v1454 = vmul.f32 %v1254, %v1160
      %v1455 = vmul.f32 %v1254, %v1161
      %v1456 = vmul.f32 %v1254, %v1162
      %v1457 = vmul.f32 %v1254, %v1163
      %v1458 = vmul.f32 %v1254, %v1164
      %v1459 = vmul.f32 %v1254, %v1165
      %v1460 = vmul.f32 %v1254, %v1166
      %v1461 = vmul.f32 %v1254, %v1167
      %v1462 = vmul.f32 %v1254, %v1168
      %v1463 = vadd.f32 %v1431, %v1447
      %v1464 = vadd.f32 %v1432, %v1448
      %v1465 = vadd.f32 %v1433, %v1449
      %v1466 = vadd.f32 %v1434, %v1450
      %v1467 = vadd.f32 %v1435, %v1451
      %v1468 = vadd.f32 %v1436, %v1452
      %v1469 = vadd.f32 %v1437, %v1453
      %v1470 = vadd.f32 %v1438, %v1454
      %v1471 = vadd.f32 %v1439, %v1455
      %v1472 = vadd.f32 %v1440, %v1456
      %v1473 = vadd.f32 %v1441, %v1457
      %v1474 = vadd.f32 %v1442, %v1458
      %v1475 = vadd.f32 %v1443, %v1459
      %v1476 = vadd.f32 %v1444, %v1460
      %v1477 = vadd.f32 %v1445, %v1461
      %v1478 = vadd.f32 %v1446, %v1462
      %1479 = vst [vmem:[#allocation5] sm:$0xff] %v1463
      %1480 = vst [vmem:[#allocation5 + $0x8] sm:$0xff] %v1464
      %1481 = vst [vmem:[#allocation5 + $0x10] sm:$0xff] %v1465
      %1482 = vst [vmem:[#allocation5 + $0x18] sm:$0xff] %v1466
      %1483 = vst [vmem:[#allocation5 + $0x20] sm:$0xff] %v1467
      %1484 = vst [vmem:[#allocation5 + $0x28] sm:$0xff] %v1468
      %1485 = vst [vmem:[#allocation5 + $0x30] sm:$0xff] %v1469
      %1486 = vst [vmem:[#allocation5 + $0x38] sm:$0xff] %v1470
      %1487 = vst [vmem:[#allocation5 + $0x40] sm:$0xff] %v1471
      %1488 = vst [vmem:[#allocation5 + $0x48] sm:$0xff] %v1472
      %1489 = vst [vmem:[#allocation5 + $0x50] sm:$0xff] %v1473
      %1490 = vst [vmem:[#allocation5 + $0x58] sm:$0xff] %v1474
      %1491 = vst [vmem:[#allocation5 + $0x60] sm:$0xff] %v1475
      %1492 = vst [vmem:[#allocation5 + $0x68] sm:$0xff] %v1476
      %1493 = vst [vmem:[#allocation5 + $0x70] sm:$0xff] %v1477
      %1494 = vst [vmem:[#allocation5 + $0x78] sm:$0xff] %v1478
      %p1495 = scmp.eq.s32.totalorder 0, 0
      // Predicated region
      $region50: #{tpu_custom_call.1} parent=44 // pred_check
        %p1496 = pneg %p1495
      $region51: #{tpu_custom_call.1} parent=44 // pred_check_branch
        %1498 = sbr.rel (%p1496) target = $region53
      $region52: #{tpu_custom_call.1} parent=44 // pred_region
        %v1499 = vlaneseq
        %v1500 = vand.u32 %v1499, 127
        %vm1501 = vcmp.eq.s32.totalorder %v1500, 0
        %v1502 = vld [vmem:[#allocation2] sm:$0xff]
        %v1503 = vld [vmem:[#allocation2 + $0x8] sm:$0xff]
        %v1504 = vld [vmem:[#allocation2 + $0x10] sm:$0xff]
        %v1505 = vld [vmem:[#allocation2 + $0x18] sm:$0xff]
        %v1506 = vld [vmem:[#allocation2 + $0x20] sm:$0xff]
        %v1507 = vld [vmem:[#allocation2 + $0x28] sm:$0xff]
        %v1508 = vld [vmem:[#allocation2 + $0x30] sm:$0xff]
        %v1509 = vld [vmem:[#allocation2 + $0x38] sm:$0xff]
        %v1510 = vld [vmem:[#allocation2 + $0x40] sm:$0xff]
        %v1511 = vld [vmem:[#allocation2 + $0x48] sm:$0xff]
        %v1512 = vld [vmem:[#allocation2 + $0x50] sm:$0xff]
        %v1513 = vld [vmem:[#allocation2 + $0x58] sm:$0xff]
        %v1514 = vld [vmem:[#allocation2 + $0x60] sm:$0xff]
        %v1515 = vld [vmem:[#allocation2 + $0x68] sm:$0xff]
        %v1516 = vld [vmem:[#allocation2 + $0x70] sm:$0xff]
        %v1517 = vld [vmem:[#allocation2 + $0x78] sm:$0xff]
        %v1518 = vadd.f32 %v1502, %v1503
        %v1519 = vadd.f32 %v1518, %v1504
        %v1520 = vadd.f32 %v1519, %v1505
        %v1521 = vadd.f32 %v1520, %v1506
        %v1522 = vadd.f32 %v1521, %v1507
        %v1523 = vadd.f32 %v1522, %v1508
        %v1524 = vadd.f32 %v1523, %v1509
        %v1525 = vadd.f32 %v1524, %v1510
        %v1526 = vadd.f32 %v1525, %v1511
        %v1527 = vadd.f32 %v1526, %v1512
        %v1528 = vadd.f32 %v1527, %v1513
        %v1529 = vadd.f32 %v1528, %v1514
        %v1530 = vadd.f32 %v1529, %v1515
        %v1531 = vadd.f32 %v1530, %v1516
        %v1532 = vadd.f32 %v1531, %v1517
        %1533 = vadd.xlane.f32.xlu0 %v1532
        %v1534 = vpop.xlane.xlu0 %1533
        %v1535 = vrot.slane %v1534, 4
        %v1536 = vadd.f32 %v1534, %v1535
        %v1537 = vrot.slane %v1536, 2
        %v1538 = vadd.f32 %v1536, %v1537
        %v1539 = vrot.slane %v1538, 1
        %v1540 = vadd.f32 %v1538, %v1539
        %s1541 = vtos %v1540
        %v1542 = vstv %s1541
        %v1543 = vsel %vm1501, %v1542, 0.0
        %vm1544 = vcmp.eq.s32.totalorder %v1500, 1
        %v1545 = vld [vmem:[#allocation3] sm:$0xff]
        %v1546 = vld [vmem:[#allocation3 + $0x8] sm:$0xff]
        %v1547 = vld [vmem:[#allocation3 + $0x10] sm:$0xff]
        %v1548 = vld [vmem:[#allocation3 + $0x18] sm:$0xff]
        %v1549 = vld [vmem:[#allocation3 + $0x20] sm:$0xff]
        %v1550 = vld [vmem:[#allocation3 + $0x28] sm:$0xff]
        %v1551 = vld [vmem:[#allocation3 + $0x30] sm:$0xff]
        %v1552 = vld [vmem:[#allocation3 + $0x38] sm:$0xff]
        %v1553 = vld [vmem:[#allocation3 + $0x40] sm:$0xff]
        %v1554 = vld [vmem:[#allocation3 + $0x48] sm:$0xff]
        %v1555 = vld [vmem:[#allocation3 + $0x50] sm:$0xff]
        %v1556 = vld [vmem:[#allocation3 + $0x58] sm:$0xff]
        %v1557 = vld [vmem:[#allocation3 + $0x60] sm:$0xff]
        %v1558 = vld [vmem:[#allocation3 + $0x68] sm:$0xff]
        %v1559 = vld [vmem:[#allocation3 + $0x70] sm:$0xff]
        %v1560 = vld [vmem:[#allocation3 + $0x78] sm:$0xff]
        %v1561 = vadd.f32 %v1545, %v1546
        %v1562 = vadd.f32 %v1561, %v1547
        %v1563 = vadd.f32 %v1562, %v1548
        %v1564 = vadd.f32 %v1563, %v1549
        %v1565 = vadd.f32 %v1564, %v1550
        %v1566 = vadd.f32 %v1565, %v1551
        %v1567 = vadd.f32 %v1566, %v1552
        %v1568 = vadd.f32 %v1567, %v1553
        %v1569 = vadd.f32 %v1568, %v1554
        %v1570 = vadd.f32 %v1569, %v1555
        %v1571 = vadd.f32 %v1570, %v1556
        %v1572 = vadd.f32 %v1571, %v1557
        %v1573 = vadd.f32 %v1572, %v1558
        %v1574 = vadd.f32 %v1573, %v1559
        %v1575 = vadd.f32 %v1574, %v1560
        %1576 = vadd.xlane.f32.xlu0 %v1575
        %v1577 = vpop.xlane.xlu0 %1576
        %v1578 = vrot.slane %v1577, 4
        %v1579 = vadd.f32 %v1577, %v1578
        %v1580 = vrot.slane %v1579, 2
        %v1581 = vadd.f32 %v1579, %v1580
        %v1582 = vrot.slane %v1581, 1
        %v1583 = vadd.f32 %v1581, %v1582
        %s1584 = vtos %v1583
        %v1585 = vstv %s1584
        %v1586 = vsel %vm1544, %v1585, 0.0
        %v1587 = vadd.f32 %v1543, %v1586
        %vm1588 = vcmp.eq.s32.totalorder %v1500, 2
        %v1589 = vld [vmem:[#allocation4] sm:$0xff]
        %v1590 = vld [vmem:[#allocation4 + $0x8] sm:$0xff]
        %v1591 = vld [vmem:[#allocation4 + $0x10] sm:$0xff]
        %v1592 = vld [vmem:[#allocation4 + $0x18] sm:$0xff]
        %v1593 = vld [vmem:[#allocation4 + $0x20] sm:$0xff]
        %v1594 = vld [vmem:[#allocation4 + $0x28] sm:$0xff]
        %v1595 = vld [vmem:[#allocation4 + $0x30] sm:$0xff]
        %v1596 = vld [vmem:[#allocation4 + $0x38] sm:$0xff]
        %v1597 = vld [vmem:[#allocation4 + $0x40] sm:$0xff]
        %v1598 = vld [vmem:[#allocation4 + $0x48] sm:$0xff]
        %v1599 = vld [vmem:[#allocation4 + $0x50] sm:$0xff]
        %v1600 = vld [vmem:[#allocation4 + $0x58] sm:$0xff]
        %v1601 = vld [vmem:[#allocation4 + $0x60] sm:$0xff]
        %v1602 = vld [vmem:[#allocation4 + $0x68] sm:$0xff]
        %v1603 = vld [vmem:[#allocation4 + $0x70] sm:$0xff]
        %v1604 = vld [vmem:[#allocation4 + $0x78] sm:$0xff]
        %v1605 = vadd.f32 %v1589, %v1590
        %v1606 = vadd.f32 %v1605, %v1591
        %v1607 = vadd.f32 %v1606, %v1592
        %v1608 = vadd.f32 %v1607, %v1593
        %v1609 = vadd.f32 %v1608, %v1594
        %v1610 = vadd.f32 %v1609, %v1595
        %v1611 = vadd.f32 %v1610, %v1596
        %v1612 = vadd.f32 %v1611, %v1597
        %v1613 = vadd.f32 %v1612, %v1598
        %v1614 = vadd.f32 %v1613, %v1599
        %v1615 = vadd.f32 %v1614, %v1600
        %v1616 = vadd.f32 %v1615, %v1601
        %v1617 = vadd.f32 %v1616, %v1602
        %v1618 = vadd.f32 %v1617, %v1603
        %v1619 = vadd.f32 %v1618, %v1604
        %1620 = vadd.xlane.f32.xlu0 %v1619
        %v1621 = vpop.xlane.xlu0 %1620
        %v1622 = vrot.slane %v1621, 4
        %v1623 = vadd.f32 %v1621, %v1622
        %v1624 = vrot.slane %v1623, 2
        %v1625 = vadd.f32 %v1623, %v1624
        %v1626 = vrot.slane %v1625, 1
        %v1627 = vadd.f32 %v1625, %v1626
        %s1628 = vtos %v1627
        %v1629 = vstv %s1628
        %v1630 = vsel %vm1588, %v1629, 0.0
        %v1631 = vadd.f32 %v1587, %v1630
        %vm1632 = vcmp.eq.s32.totalorder %v1500, 3
        %v1633 = vld [vmem:[#allocation5] sm:$0xff]
        %v1634 = vld [vmem:[#allocation5 + $0x8] sm:$0xff]
        %v1635 = vld [vmem:[#allocation5 + $0x10] sm:$0xff]
        %v1636 = vld [vmem:[#allocation5 + $0x18] sm:$0xff]
        %v1637 = vld [vmem:[#allocation5 + $0x20] sm:$0xff]
        %v1638 = vld [vmem:[#allocation5 + $0x28] sm:$0xff]
        %v1639 = vld [vmem:[#allocation5 + $0x30] sm:$0xff]
        %v1640 = vld [vmem:[#allocation5 + $0x38] sm:$0xff]
        %v1641 = vld [vmem:[#allocation5 + $0x40] sm:$0xff]
        %v1642 = vld [vmem:[#allocation5 + $0x48] sm:$0xff]
        %v1643 = vld [vmem:[#allocation5 + $0x50] sm:$0xff]
        %v1644 = vld [vmem:[#allocation5 + $0x58] sm:$0xff]
        %v1645 = vld [vmem:[#allocation5 + $0x60] sm:$0xff]
        %v1646 = vld [vmem:[#allocation5 + $0x68] sm:$0xff]
        %v1647 = vld [vmem:[#allocation5 + $0x70] sm:$0xff]
        %v1648 = vld [vmem:[#allocation5 + $0x78] sm:$0xff]
        %v1649 = vadd.f32 %v1633, %v1634
        %v1650 = vadd.f32 %v1649, %v1635
        %v1651 = vadd.f32 %v1650, %v1636
        %v1652 = vadd.f32 %v1651, %v1637
        %v1653 = vadd.f32 %v1652, %v1638
        %v1654 = vadd.f32 %v1653, %v1639
        %v1655 = vadd.f32 %v1654, %v1640
        %v1656 = vadd.f32 %v1655, %v1641
        %v1657 = vadd.f32 %v1656, %v1642
        %v1658 = vadd.f32 %v1657, %v1643
        %v1659 = vadd.f32 %v1658, %v1644
        %v1660 = vadd.f32 %v1659, %v1645
        %v1661 = vadd.f32 %v1660, %v1646
        %v1662 = vadd.f32 %v1661, %v1647
        %v1663 = vadd.f32 %v1662, %v1648
        %1664 = vadd.xlane.f32.xlu0 %v1663
        %v1665 = vpop.xlane.xlu0 %1664
        %v1666 = vrot.slane %v1665, 4
        %v1667 = vadd.f32 %v1665, %v1666
        %v1668 = vrot.slane %v1667, 2
        %v1669 = vadd.f32 %v1667, %v1668
        %v1670 = vrot.slane %v1669, 1
        %v1671 = vadd.f32 %v1669, %v1670
        %s1672 = vtos %v1671
        %v1673 = vstv %s1672
        %v1674 = vsel %vm1632, %v1673, 0.0
        %v1675 = vadd.f32 %v1631, %v1674
        %1676 = vst [vmem:[#allocation9] sm:$0x1] %v1675
      $region53: #{tpu_custom_call.1} parent=44 // pred_fallthru
        _
    $region45: #{tpu_custom_call.1} parent=1 // pred_fallthru
      _
    // Predicated region
    $region54: #{tpu_custom_call.1} parent=1 // pred_check
      _
    $region55: #{tpu_custom_call.1} parent=1 // pred_check_branch
      %1678 = sbr.rel (0) target = $region57
    $region56: #{tpu_custom_call.1} parent=1 // pred_region
      %s1680 = ssub.s32 16, 16
      %1681 = vsyncadd [#allocation7], %s1680
      %s1683 = sshll.u32 [#allocation9], 4
      %s1684 = int_to_ptr.vmem [resolvable:$true] %s1683
      %1686 = dma.vmem_to_hbm [thread:$0]  %s1684, 16, %s9, [#allocation7]
    $region57: #{tpu_custom_call.1} parent=1 // pred_fallthru
      _
    // Predicated region
    $region58: #{tpu_custom_call.1} parent=1 // pred_check
      _
    $region59: #{tpu_custom_call.1} parent=1 // pred_check_branch
      %1688 = sbr.rel (0) target = $region61
    $region60: #{tpu_custom_call.1} parent=1 // pred_region
      %1689 = dma.done [#allocation7], 16
    $region61: #{tpu_custom_call.1} parent=1 // pred_fallthru
      _
    %1690 = vsyncpa [#allocation7], 1
    %1691 = vsyncpa [#allocation8], 1

</llo_original>
